<compile_context>
chip_gen: v6e
topology: v6e:2x2x1
jax: 0.10.0
libtpu: 0.0.40
codegen_flags: <defaults>
</compile_context>

<pallas_src>
import jax
import jax.numpy as jnp
from jax import lax
from jax.experimental import pallas as pl
from jax.experimental.pallas import tpu as pltpu

EMBED_DIM = 50
HIDDEN_DIM = 400
NUM_WORDS = 6              # fc1 expects 6 * embedding_dim inputs

HIDDEN_PAD = 512           # 400 -> 512 (4 x 128 lanes)
MAX_B_TILE = 512           # max batch tile (weights stay resident either way)


def _round_up(x, m):
    return (x + m - 1) // m * m


def _choose_batch_tiling(B):
    """Pick (b_tile, b_pad): one tile for small B, >=2 tiles for large B (v7x TCs)."""
    bp8 = _round_up(B, 8)
    if bp8 <= 256:
        b_tile = bp8
    else:
        b_tile = min(MAX_B_TILE, _round_up(pl.cdiv(bp8, 2), 8))
    b_pad = _round_up(B, b_tile)
    return b_tile, b_pad


def _fused_kernel(ids_ref, w1e_ref, b1_ref, w2_ref, b2_ref, o_ref):
    # ids_ref : (Bt, 6)           int32 token ids for this batch tile
    # w1e_ref : (6*V_pad, 512)    bf16  embedding folded into fc1 (resident)
    # b1_ref  : (1, 512)          f32
    # w2_ref  : (512, 128)        bf16  fc2 weights, output padded to 128 lanes
    # b2_ref  : (1, 128)          f32   padded output lanes are -1e30
    # o_ref   : (Bt, 128)         f32   lane-dense log-softmax output
    ids = ids_ref[...]                                   # (Bt, 6) int32
    bt = ids.shape[0]
    k1 = w1e_ref.shape[0]                                # 6 * V_pad
    v_pad = k1 // NUM_WORDS

    # Packed one-hot over the folded (6*V_pad) axis: hot column = w*V_pad + ids[:, w].
    col = lax.broadcasted_iota(jnp.int32, (bt, k1), 1)
    match = col == ids[:, 0:1]
    for w in range(1, NUM_WORDS):                        # static unroll (5 compares)
        match = jnp.logical_or(match, col == (ids[:, w:w + 1] + w * v_pad))
    onehot = match.astype(jnp.bfloat16)                  # exact 0/1 values

    # Fused embedding gather + flatten + fc1: single K=768 bf16 MXU matmul (f32 acc).
    acc = jnp.dot(onehot, w1e_ref[...], preferred_element_type=jnp.float32)
    h = jnp.maximum(acc + b1_ref[...], 0.0)              # fc1 bias + ReLU in f32

    # TODO(synk): Dropout(p=0.3) omitted — inference (model.eval()) semantics.

    logits = jnp.dot(h.astype(jnp.bfloat16), w2_ref[...],
                     preferred_element_type=jnp.float32) + b2_ref[...]

    # Numerically-stable log_softmax in f32; padded lanes carry -1e30 bias so they
    # contribute ~0 to the sum and never win the max.
    m = jnp.max(logits, axis=-1, keepdims=True)
    shifted = logits - m
    lse = jnp.log(jnp.sum(jnp.exp(shifted), axis=-1, keepdims=True))
    o_ref[...] = shifted - lse


def prepare_params(params, output_size):
    """One-time fold of the embedding into fc1 + padding to (8,128)-aligned bf16 tiles."""
    emb = params["embedding"].astype(jnp.float32)
    w1 = params["w1"].astype(jnp.float32)
    b1 = params["b1"].astype(jnp.float32)
    w2 = params["w2"].astype(jnp.float32)
    b2 = params["b2"].astype(jnp.float32)

    vocab = emb.shape[0]
    v_pad = _round_up(vocab, 128)
    out_pad = _round_up(output_size, 128)

    # W1_eff[w, v, :] = emb[v] @ W1[w*50:(w+1)*50, :]  (computed in f32, stored bf16)
    w1_3d = w1.reshape(NUM_WORDS, EMBED_DIM, HIDDEN_DIM)
    w1_eff = jnp.einsum("ve,wed->wvd", emb, w1_3d)               # (6, vocab, 400)
    w1e_pad = jnp.zeros((NUM_WORDS, v_pad, HIDDEN_PAD), jnp.float32)
    w1e_pad = w1e_pad.at[:, :vocab, :HIDDEN_DIM].set(w1_eff)
    w1e_pad = w1e_pad.reshape(NUM_WORDS * v_pad, HIDDEN_PAD).astype(jnp.bfloat16)

    b1_pad = jnp.zeros((1, HIDDEN_PAD), jnp.float32).at[0, :HIDDEN_DIM].set(b1)

    w2_pad = jnp.zeros((HIDDEN_PAD, out_pad), jnp.float32)
    w2_pad = w2_pad.at[:HIDDEN_DIM, :output_size].set(w2).astype(jnp.bfloat16)

    # Padded logit lanes forced to a huge negative f32 bias -> exact log_softmax.
    b2_pad = jnp.full((1, out_pad), -1e30, jnp.float32)
    b2_pad = b2_pad.at[0, :output_size].set(b2)

    return {"w1_eff": w1e_pad, "b1": b1_pad, "w2": w2_pad, "b2": b2_pad,
            "output_size": output_size}


def base_model_forward(token_ids, prepped):
    """token_ids: (B, 6) int ids. Returns (B, output_size) f32 log-probs."""
    output_size = prepped["output_size"]
    w1_eff = prepped["w1_eff"]
    k1, hidden_pad = w1_eff.shape
    out_pad = prepped["b2"].shape[1]

    B = token_ids.shape[0]
    b_tile, b_pad = _choose_batch_tiling(B)
    ids = token_ids.astype(jnp.int32)
    if b_pad != B:
        ids = jnp.pad(ids, ((0, b_pad - B), (0, 0)))     # pad rows with id 0

    grid = (b_pad // b_tile,)

    flops = 2 * b_pad * (k1 * hidden_pad + hidden_pad * out_pad)
    bytes_accessed = (ids.size * 4
                      + w1_eff.size * 2                  # bf16
                      + prepped["b1"].size * 4
                      + prepped["w2"].size * 2           # bf16
                      + prepped["b2"].size * 4
                      + b_pad * out_pad * 4)
    cost = pl.CostEstimate(flops=flops,
                           transcendentals=b_pad * (out_pad + 1),
                           bytes_accessed=bytes_accessed)

    out = pl.pallas_call(
        _fused_kernel,
        out_shape=jax.ShapeDtypeStruct((b_pad, out_pad), jnp.float32),
        grid=grid,
        in_specs=[
            pl.BlockSpec((b_tile, NUM_WORDS), lambda i: (i, 0)),     # ids (tiled over B)
            pl.BlockSpec((k1, hidden_pad), lambda i: (0, 0)),        # folded fc1 (resident)
            pl.BlockSpec((1, hidden_pad), lambda i: (0, 0)),         # b1
            pl.BlockSpec((hidden_pad, out_pad), lambda i: (0, 0)),   # w2
            pl.BlockSpec((1, out_pad), lambda i: (0, 0)),            # b2
        ],
        out_specs=pl.BlockSpec((b_tile, out_pad), lambda i: (i, 0)),
        compiler_params=pltpu.CompilerParams(
            dimension_semantics=("parallel",),   # shards B tiles across TCs on v7x
        ),
        cost_estimate=cost,
    )(ids, w1_eff, prepped["b1"], prepped["w2"], prepped["b2"])

    if b_pad != B or out_pad != output_size:
        out = out[:B, :output_size]
    return out


def init_params(key, word_vocab_size, output_size):
    k_emb, k_w1, k_b1, k_w2, k_b2 = jax.random.split(key, 5)
    in1 = NUM_WORDS * EMBED_DIM
    emb = jax.random.normal(k_emb, (word_vocab_size, EMBED_DIM), jnp.float32)
    lim1 = 1.0 / jnp.sqrt(in1)
    w1 = jax.random.uniform(k_w1, (in1, HIDDEN_DIM), jnp.float32, -lim1, lim1)
    b1 = jax.random.uniform(k_b1, (HIDDEN_DIM,), jnp.float32, -lim1, lim1)
    lim2 = 1.0 / jnp.sqrt(HIDDEN_DIM)
    w2 = jax.random.uniform(k_w2, (HIDDEN_DIM, output_size), jnp.float32, -lim2, lim2)
    b2 = jax.random.uniform(k_b2, (output_size,), jnp.float32, -lim2, lim2)
    return {"embedding": emb, "w1": w1, "b1": b1, "w2": w2, "b2": b2}


def reference_forward(token_ids, params):
    x = jnp.take(params["embedding"], token_ids, axis=0)
    x = x.reshape(token_ids.shape[0], -1)
    h = jnp.maximum(x @ params["w1"] + params["b1"], 0.0)
    logits = h @ params["w2"] + params["b2"]
    return jax.nn.log_softmax(logits, axis=-1)


if __name__ == "__main__":
    word_vocab_size = 100
    output_size = 8
    batch = 2

    key = jax.random.PRNGKey(0)
    k_params, k_tok = jax.random.split(key)
    params = init_params(k_params, word_vocab_size, output_size)
    token_ids = jax.random.randint(k_tok, (batch, NUM_WORDS), 0, word_vocab_size,
                                   dtype=jnp.int32)

    prepped = prepare_params(params, output_size)
    out = jax.block_until_ready(base_model_forward(token_ids, prepped))

    # sanity: shape, normalization, and parity with a plain-JAX f32 reference
    assert out.shape == (batch, output_size)
    assert jnp.allclose(jnp.sum(jnp.exp(out), axis=-1), 1.0, atol=1e-3)
    ref = reference_forward(token_ids, params)
    # bf16 matmul operands (f32 accumulation) -> slightly looser tolerance than pure f32
    assert jnp.allclose(out, ref, atol=2e-2, rtol=2e-2)
    print("KERNEL_OK")
</pallas_src>

<mosaic_0001>
module attributes {stable_mosaic.version = 11 : i64} {
  func.func @_fused_kernel(%arg0: i32, %arg1: memref<8x6xi32, #tpu.memory_space<vmem>>, %arg2: memref<768x512xbf16, #tpu.memory_space<vmem>>, %arg3: memref<1x512xf32, #tpu.memory_space<vmem>>, %arg4: memref<512x128xbf16, #tpu.memory_space<vmem>>, %arg5: memref<1x128xf32, #tpu.memory_space<vmem>>, %arg6: memref<8x128xf32, #tpu.memory_space<vmem>>) attributes {dimension_semantics = [#tpu.dimension_semantics<parallel>], iteration_bounds = array<i64: 1>, scalar_prefetch = 0 : i64, scratch_operands = 0 : i64, tpu.core_type = #tpu.core_type<tc>, window_params = [{transform_indices = @transform_0, window_bounds = array<i64: 8, 6>}, {pipeline_mode = #tpu.pipeline_mode<synchronous>, transform_indices = @transform_1, window_bounds = array<i64: 768, 512>}, {pipeline_mode = #tpu.pipeline_mode<synchronous>, transform_indices = @transform_2, window_bounds = array<i64: 1, 512>}, {pipeline_mode = #tpu.pipeline_mode<synchronous>, transform_indices = @transform_3, window_bounds = array<i64: 512, 128>}, {pipeline_mode = #tpu.pipeline_mode<synchronous>, transform_indices = @transform_4, window_bounds = array<i64: 1, 128>}, {transform_indices = @transform_5, window_bounds = array<i64: 8, 128>}]} {
    %c0 = arith.constant 0 : index
    %c0_0 = arith.constant 0 : index
    %0 = vector.load %arg1[%c0, %c0_0] : memref<8x6xi32, #tpu.memory_space<vmem>>, vector<8x6xi32>
    %1 = tpu.iota {dimensions = array<i32: 1>} : vector<8x768xi32>
    %2 = vector.extract_strided_slice %0 {offsets = [0, 0], sizes = [8, 1], strides = [1, 1]} : vector<8x6xi32> to vector<8x1xi32>
    %3 = vector.broadcast %2 : vector<8x1xi32> to vector<8x768xi32>
    %4 = arith.cmpi eq, %1, %3 : vector<8x768xi32>
    %5 = vector.extract_strided_slice %0 {offsets = [0, 1], sizes = [8, 1], strides = [1, 1]} : vector<8x6xi32> to vector<8x1xi32>
    %c128_i32 = arith.constant 128 : i32
    %6 = vector.broadcast %c128_i32 : i32 to vector<8x1xi32>
    %7 = arith.addi %5, %6 : vector<8x1xi32>
    %8 = vector.broadcast %7 : vector<8x1xi32> to vector<8x768xi32>
    %9 = arith.cmpi eq, %1, %8 : vector<8x768xi32>
    %10 = arith.ori %4, %9 : vector<8x768xi1>
    %11 = vector.extract_strided_slice %0 {offsets = [0, 2], sizes = [8, 1], strides = [1, 1]} : vector<8x6xi32> to vector<8x1xi32>
    %c256_i32 = arith.constant 256 : i32
    %12 = vector.broadcast %c256_i32 : i32 to vector<8x1xi32>
    %13 = arith.addi %11, %12 : vector<8x1xi32>
    %14 = vector.broadcast %13 : vector<8x1xi32> to vector<8x768xi32>
    %15 = arith.cmpi eq, %1, %14 : vector<8x768xi32>
    %16 = arith.ori %10, %15 : vector<8x768xi1>
    %17 = vector.extract_strided_slice %0 {offsets = [0, 3], sizes = [8, 1], strides = [1, 1]} : vector<8x6xi32> to vector<8x1xi32>
    %c384_i32 = arith.constant 384 : i32
    %18 = vector.broadcast %c384_i32 : i32 to vector<8x1xi32>
    %19 = arith.addi %17, %18 : vector<8x1xi32>
    %20 = vector.broadcast %19 : vector<8x1xi32> to vector<8x768xi32>
    %21 = arith.cmpi eq, %1, %20 : vector<8x768xi32>
    %22 = arith.ori %16, %21 : vector<8x768xi1>
    %23 = vector.extract_strided_slice %0 {offsets = [0, 4], sizes = [8, 1], strides = [1, 1]} : vector<8x6xi32> to vector<8x1xi32>
    %c512_i32 = arith.constant 512 : i32
    %24 = vector.broadcast %c512_i32 : i32 to vector<8x1xi32>
    %25 = arith.addi %23, %24 : vector<8x1xi32>
    %26 = vector.broadcast %25 : vector<8x1xi32> to vector<8x768xi32>
    %27 = arith.cmpi eq, %1, %26 : vector<8x768xi32>
    %28 = arith.ori %22, %27 : vector<8x768xi1>
    %29 = vector.extract_strided_slice %0 {offsets = [0, 5], sizes = [8, 1], strides = [1, 1]} : vector<8x6xi32> to vector<8x1xi32>
    %c640_i32 = arith.constant 640 : i32
    %30 = vector.broadcast %c640_i32 : i32 to vector<8x1xi32>
    %31 = arith.addi %29, %30 : vector<8x1xi32>
    %32 = vector.broadcast %31 : vector<8x1xi32> to vector<8x768xi32>
    %33 = arith.cmpi eq, %1, %32 : vector<8x768xi32>
    %34 = arith.ori %28, %33 : vector<8x768xi1>
    %35 = arith.extui %34 : vector<8x768xi1> to vector<8x768xi32>
    %36 = arith.sitofp %35 : vector<8x768xi32> to vector<8x768xf32>
    %37 = arith.truncf %36 : vector<8x768xf32> to vector<8x768xbf16>
    %c0_1 = arith.constant 0 : index
    %c0_2 = arith.constant 0 : index
    %38 = vector.load %arg2[%c0_1, %c0_2] : memref<768x512xbf16, #tpu.memory_space<vmem>>, vector<768x512xbf16>
    %cst = arith.constant dense<0.000000e+00> : vector<8x512xf32>
    %39 = tpu.matmul %37, %38, %cst {dimension_numbers = #tpu.dot_dimension_numbers<[1], [0], [0], [1], [0, 0, 1, 1], [], []>} : vector<8x768xbf16>, vector<768x512xbf16>, vector<8x512xf32> -> vector<8x512xf32>
    %c0_3 = arith.constant 0 : index
    %c0_4 = arith.constant 0 : index
    %40 = vector.load %arg3[%c0_3, %c0_4] : memref<1x512xf32, #tpu.memory_space<vmem>>, vector<1x512xf32>
    %41 = vector.broadcast %40 : vector<1x512xf32> to vector<8x512xf32>
    %42 = arith.addf %39, %41 : vector<8x512xf32>
    %cst_5 = arith.constant 0.000000e+00 : f32
    %43 = vector.broadcast %cst_5 : f32 to vector<8x512xf32>
    %44 = arith.maximumf %42, %43 : vector<8x512xf32>
    %45 = arith.truncf %44 : vector<8x512xf32> to vector<8x512xbf16>
    %c0_6 = arith.constant 0 : index
    %c0_7 = arith.constant 0 : index
    %46 = vector.load %arg4[%c0_6, %c0_7] : memref<512x128xbf16, #tpu.memory_space<vmem>>, vector<512x128xbf16>
    %cst_8 = arith.constant dense<0.000000e+00> : vector<8x128xf32>
    %47 = tpu.matmul %45, %46, %cst_8 {dimension_numbers = #tpu.dot_dimension_numbers<[1], [0], [0], [1], [0, 0, 1, 1], [], []>} : vector<8x512xbf16>, vector<512x128xbf16>, vector<8x128xf32> -> vector<8x128xf32>
    %c0_9 = arith.constant 0 : index
    %c0_10 = arith.constant 0 : index
    %48 = vector.load %arg5[%c0_9, %c0_10] : memref<1x128xf32, #tpu.memory_space<vmem>>, vector<1x128xf32>
    %49 = vector.broadcast %48 : vector<1x128xf32> to vector<8x128xf32>
    %50 = arith.addf %47, %49 : vector<8x128xf32>
    %cst_11 = arith.constant dense<0xFF800000> : vector<8xf32>
    %51 = vector.multi_reduction <maximumf>, %50, %cst_11 [1] : vector<8x128xf32> to vector<8xf32>
    %52 = vector.shape_cast %51 : vector<8xf32> to vector<8x1xf32>
    %53 = vector.broadcast %52 : vector<8x1xf32> to vector<8x128xf32>
    %54 = arith.subf %50, %53 : vector<8x128xf32>
    %55 = math.exp %54 : vector<8x128xf32>
    %cst_12 = arith.constant dense<0.000000e+00> : vector<8xf32>
    %56 = vector.multi_reduction <add>, %55, %cst_12 [1] : vector<8x128xf32> to vector<8xf32>
    %57 = vector.shape_cast %56 : vector<8xf32> to vector<8x1xf32>
    %58 = math.log %57 : vector<8x1xf32>
    %59 = vector.broadcast %58 : vector<8x1xf32> to vector<8x128xf32>
    %60 = arith.subf %54, %59 : vector<8x128xf32>
    %c0_13 = arith.constant 0 : index
    %c0_14 = arith.constant 0 : index
    %61 = vector.load %arg6[%c0_13, %c0_14] : memref<8x128xf32, #tpu.memory_space<vmem>>, vector<8x128xf32>
    tpu.vector_store %arg6[%c0_13, %c0_14], %60 {strides = array<i32>} : memref<8x128xf32, #tpu.memory_space<vmem>>, vector<8x128xf32>,
    return
  }
  func.func @transform_0(%arg0: i32) -> (i32, i32) {
    %c0_i32 = arith.constant 0 : i32
    %c0_i32_0 = arith.constant 0 : i32
    return %arg0, %c0_i32 : i32, i32
  }
  func.func @transform_1(%arg0: i32) -> (i32, i32) {
    %c0_i32 = arith.constant 0 : i32
    %c0_i32_0 = arith.constant 0 : i32
    %c0_i32_1 = arith.constant 0 : i32
    return %c0_i32, %c0_i32_0 : i32, i32
  }
  func.func @transform_2(%arg0: i32) -> (i32, i32) {
    %c0_i32 = arith.constant 0 : i32
    %c0_i32_0 = arith.constant 0 : i32
    %c0_i32_1 = arith.constant 0 : i32
    return %c0_i32, %c0_i32_0 : i32, i32
  }
  func.func @transform_3(%arg0: i32) -> (i32, i32) {
    %c0_i32 = arith.constant 0 : i32
    %c0_i32_0 = arith.constant 0 : i32
    %c0_i32_1 = arith.constant 0 : i32
    return %c0_i32, %c0_i32_0 : i32, i32
  }
  func.func @transform_4(%arg0: i32) -> (i32, i32) {
    %c0_i32 = arith.constant 0 : i32
    %c0_i32_0 = arith.constant 0 : i32
    %c0_i32_1 = arith.constant 0 : i32
    return %c0_i32, %c0_i32_0 : i32, i32
  }
  func.func @transform_5(%arg0: i32) -> (i32, i32) {
    %c0_i32 = arith.constant 0 : i32
    %c0_i32_0 = arith.constant 0 : i32
    return %arg0, %c0_i32 : i32, i32
  }
}

</mosaic_0001>

<llo_original>
// kernel: tpu_custom_call.1
$region0: #{tpu_custom_call.1}
  #allocation0 [shape = 'u32[]', space=smem, size = 0x4, offset = 0x4, fixed_abs, tag = 'smem constant byte address 0x4 - core index']
  #allocation1 [shape = 'u32[144,128]{1,0:T(1,128)}', space=vmem, size = 0x12000, scoped, tag = 'internal scratch']
  %s0 = inlined_call_operand.hbm [shape: s32[8,6], index: 0, kind: input, shape index: {}]
  %s1 = inlined_call_operand.hbm [shape: bf16[768,512], index: 1, kind: input, shape index: {}]
  %s2 = inlined_call_operand.hbm [shape: f32[1,512], index: 2, kind: input, shape index: {}]
  %s3 = inlined_call_operand.hbm [shape: bf16[512,128], index: 3, kind: input, shape index: {}]
  %s4 = inlined_call_operand.vmem [shape: f32[1,128], index: 4, kind: input, shape index: {}]
  %s5 = inlined_call_operand.hbm [shape: f32[8,128], index: 5, kind: output, shape index: {}]
  %s6 = sld [smem:[#allocation0]]
  $region46: #{tpu_custom_call.1} parent=0
    _
  %s8 = ssub.s32 1, %s6
  %s9 = scalar_select 0, %s8, %s6
  $region1: #{tpu_custom_call.1} parent=0
    #allocation2 [shape = 'u8[4096]{0}', space=vmem, size = 0x1000, scoped, tag = 'input window, operand 0, single buffered']
    #allocation3 [shape = 's32[1]{0}', space=sflag, size = 0x4, scoped, tag = 'scoped memory for tpu_custom_call.1']
    #allocation4 [shape = 's32[1]{0}', space=sflag, size = 0x4, scoped, tag = 'scoped memory for tpu_custom_call.1']
    #allocation5 [shape = 'u8[786432]{0}', space=vmem, size = 0xc0000, scoped, tag = 'input window, operand 1, single buffered']
    #allocation6 [shape = 's32[1]{0}', space=sflag, size = 0x4, scoped, tag = 'scoped memory for tpu_custom_call.1']
    #allocation7 [shape = 'u8[2048]{0}', space=vmem, size = 0x800, scoped, tag = 'input window, operand 2, single buffered']
    #allocation8 [shape = 'u8[131072]{0}', space=vmem, size = 0x20000, scoped, tag = 'input window, operand 3, single buffered']
    #allocation9 [shape = 's32[1]{0}', space=sflag, size = 0x4, scoped, tag = 'scoped memory for tpu_custom_call.1']
    #allocation10 [shape = 'u8[4096]{0}', space=vmem, size = 0x1000, scoped, tag = 'output window, operand 0, single buffered']
    %10 = vsyncpa [#allocation3], 0
    %11 = vsyncpa [#allocation6], 0
    %12 = vsyncpa [#allocation9], 0
    %13 = vsyncpa [#allocation4], 0
    // Predicated region
    $region2: #{tpu_custom_call.1} parent=1 // pred_check
      _
    $region3: #{tpu_custom_call.1} parent=1 // pred_check_branch
      %15 = sbr.rel (0) target = $region5
    $region4: #{tpu_custom_call.1} parent=1 // pred_region
      %s17 = ssub.s32 128, 128
      %18 = vsyncadd [#allocation3], %s17
      %s20 = sshll.u32 [#allocation2], 4
      %s21 = int_to_ptr.vmem [resolvable:$true] %s20
      %23 = dma.hbm_to_vmem [thread:$0]  %s0, 128, %s21, [#allocation3]
    $region5: #{tpu_custom_call.1} parent=1 // pred_fallthru
      _
    // Predicated region
    $region6: #{tpu_custom_call.1} parent=1 // pred_check
      _
    $region7: #{tpu_custom_call.1} parent=1 // pred_check_branch
      %25 = sbr.rel (0) target = $region9
    $region8: #{tpu_custom_call.1} parent=1 // pred_region
      %s27 = ssub.s32 24576, 24576
      %28 = vsyncadd [#allocation6], %s27
      %s29 = sshll.u32 [#allocation5], 4
      %s30 = int_to_ptr.vmem [resolvable:$true] %s29
      %35 = dma.hbm_to_vmem [thread:$0]  %s1, 24576, %s30, [#allocation6], 256, 256, 16
    $region9: #{tpu_custom_call.1} parent=1 // pred_fallthru
      _
    // Predicated region
    $region10: #{tpu_custom_call.1} parent=1 // pred_check
      _
    $region11: #{tpu_custom_call.1} parent=1 // pred_check_branch
      %37 = sbr.rel (0) target = $region13
    $region12: #{tpu_custom_call.1} parent=1 // pred_region
      %s39 = ssub.s32 64, 64
      %40 = vsyncadd [#allocation6], %s39
      %s42 = sshll.u32 [#allocation7], 4
      %s43 = int_to_ptr.vmem [resolvable:$true] %s42
      %45 = dma.hbm_to_vmem [thread:$0]  %s2, 64, %s43, [#allocation6]
    $region13: #{tpu_custom_call.1} parent=1 // pred_fallthru
      _
    // Predicated region
    $region14: #{tpu_custom_call.1} parent=1 // pred_check
      _
    $region15: #{tpu_custom_call.1} parent=1 // pred_check_branch
      %47 = sbr.rel (0) target = $region17
    $region16: #{tpu_custom_call.1} parent=1 // pred_region
      %s49 = ssub.s32 4096, 4096
      %50 = vsyncadd [#allocation9], %s49
      %s51 = sshll.u32 [#allocation8], 4
      %s52 = int_to_ptr.vmem [resolvable:$true] %s51
      %57 = dma.hbm_to_vmem [thread:$0]  %s3, 4096, %s52, [#allocation9], 64, 64, 4
    $region17: #{tpu_custom_call.1} parent=1 // pred_fallthru
      _
    // Predicated region
    $region18: #{tpu_custom_call.1} parent=1 // pred_check
      _
    $region19: #{tpu_custom_call.1} parent=1 // pred_check_branch
      %59 = sbr.rel (0) target = $region21
    $region20: #{tpu_custom_call.1} parent=1 // pred_region
      _
    $region21: #{tpu_custom_call.1} parent=1 // pred_fallthru
      _
    // Predicated region
    $region22: #{tpu_custom_call.1} parent=1 // pred_check
      _
    $region23: #{tpu_custom_call.1} parent=1 // pred_check_branch
      %61 = sbr.rel (0) target = $region25
    $region24: #{tpu_custom_call.1} parent=1 // pred_region
      %62 = dma.done [#allocation3], 128
    $region25: #{tpu_custom_call.1} parent=1 // pred_fallthru
      _
    // Predicated region
    $region26: #{tpu_custom_call.1} parent=1 // pred_check
      _
    $region27: #{tpu_custom_call.1} parent=1 // pred_check_branch
      %64 = sbr.rel (0) target = $region29
    $region28: #{tpu_custom_call.1} parent=1 // pred_region
      %65 = dma.done [#allocation6], 24576
    $region29: #{tpu_custom_call.1} parent=1 // pred_fallthru
      _
    // Predicated region
    $region30: #{tpu_custom_call.1} parent=1 // pred_check
      _
    $region31: #{tpu_custom_call.1} parent=1 // pred_check_branch
      %67 = sbr.rel (0) target = $region33
    $region32: #{tpu_custom_call.1} parent=1 // pred_region
      %68 = dma.done [#allocation6], 64
    $region33: #{tpu_custom_call.1} parent=1 // pred_fallthru
      _
    // Predicated region
    $region34: #{tpu_custom_call.1} parent=1 // pred_check
      _
    $region35: #{tpu_custom_call.1} parent=1 // pred_check_branch
      %70 = sbr.rel (0) target = $region37
    $region36: #{tpu_custom_call.1} parent=1 // pred_region
      %71 = dma.done [#allocation9], 4096
    $region37: #{tpu_custom_call.1} parent=1 // pred_fallthru
      _
    %v73 = vld [vmem:[#allocation2] sm:$0xff]
    %v74 = vlaneseq
    %v75 = vand.u32 %v74, 127
    %v76 = vadd.s32 %v75, 128
    %v77 = vadd.s32 %v75, 256
    %v78 = vadd.s32 %v75, 384
    %v79 = vadd.s32 %v75, 512
    %v80 = vadd.s32 %v75, 640
    %81 = vset.pattern.permute.xlu0 0
    %82 = vperm.xlu0 %81, %v73
    %v83 = vpop.permute.xlu0 %82
    %vm84 = vcmp.eq.s32.totalorder %v75, %v83
    %vm85 = vcmp.eq.s32.totalorder %v76, %v83
    %vm86 = vcmp.eq.s32.totalorder %v77, %v83
    %vm87 = vcmp.eq.s32.totalorder %v78, %v83
    %vm88 = vcmp.eq.s32.totalorder %v79, %v83
    %vm89 = vcmp.eq.s32.totalorder %v80, %v83
    %v90 = vadd.s32 %v73, 128
    %91 = vset.pattern.permute.xlu0 1
    %92 = vperm.xlu0 %91, %v90
    %v93 = vpop.permute.xlu0 %92
    %vm94 = vcmp.eq.s32.totalorder %v75, %v93
    %vm95 = vcmp.eq.s32.totalorder %v76, %v93
    %vm96 = vcmp.eq.s32.totalorder %v77, %v93
    %vm97 = vcmp.eq.s32.totalorder %v78, %v93
    %vm98 = vcmp.eq.s32.totalorder %v79, %v93
    %vm99 = vcmp.eq.s32.totalorder %v80, %v93
    %vm100 = vmor %vm84, %vm94
    %vm101 = vmor %vm85, %vm95
    %vm102 = vmor %vm86, %vm96
    %vm103 = vmor %vm87, %vm97
    %vm104 = vmor %vm88, %vm98
    %vm105 = vmor %vm89, %vm99
    %v106 = vadd.s32 %v73, 256
    %107 = vset.pattern.permute.xlu0 2
    %108 = vperm.xlu0 %107, %v106
    %v109 = vpop.permute.xlu0 %108
    %vm110 = vcmp.eq.s32.totalorder %v75, %v109
    %vm111 = vcmp.eq.s32.totalorder %v76, %v109
    %vm112 = vcmp.eq.s32.totalorder %v77, %v109
    %vm113 = vcmp.eq.s32.totalorder %v78, %v109
    %vm114 = vcmp.eq.s32.totalorder %v79, %v109
    %vm115 = vcmp.eq.s32.totalorder %v80, %v109
    %vm116 = vmor %vm100, %vm110
    %vm117 = vmor %vm101, %vm111
    %vm118 = vmor %vm102, %vm112
    %vm119 = vmor %vm103, %vm113
    %vm120 = vmor %vm104, %vm114
    %vm121 = vmor %vm105, %vm115
    %v122 = vadd.s32 %v73, 384
    %123 = vset.pattern.permute.xlu0 3
    %124 = vperm.xlu0 %123, %v122
    %v125 = vpop.permute.xlu0 %124
    %vm126 = vcmp.eq.s32.totalorder %v75, %v125
    %vm127 = vcmp.eq.s32.totalorder %v76, %v125
    %vm128 = vcmp.eq.s32.totalorder %v77, %v125
    %vm129 = vcmp.eq.s32.totalorder %v78, %v125
    %vm130 = vcmp.eq.s32.totalorder %v79, %v125
    %vm131 = vcmp.eq.s32.totalorder %v80, %v125
    %vm132 = vmor %vm116, %vm126
    %vm133 = vmor %vm117, %vm127
    %vm134 = vmor %vm118, %vm128
    %vm135 = vmor %vm119, %vm129
    %vm136 = vmor %vm120, %vm130
    %vm137 = vmor %vm121, %vm131
    %v138 = vadd.s32 %v73, 512
    %139 = vset.pattern.permute.xlu0 4
    %140 = vperm.xlu0 %139, %v138
    %v141 = vpop.permute.xlu0 %140
    %vm142 = vcmp.eq.s32.totalorder %v75, %v141
    %vm143 = vcmp.eq.s32.totalorder %v76, %v141
    %vm144 = vcmp.eq.s32.totalorder %v77, %v141
    %vm145 = vcmp.eq.s32.totalorder %v78, %v141
    %vm146 = vcmp.eq.s32.totalorder %v79, %v141
    %vm147 = vcmp.eq.s32.totalorder %v80, %v141
    %vm148 = vmor %vm132, %vm142
    %vm149 = vmor %vm133, %vm143
    %vm150 = vmor %vm134, %vm144
    %vm151 = vmor %vm135, %vm145
    %vm152 = vmor %vm136, %vm146
    %vm153 = vmor %vm137, %vm147
    %v154 = vadd.s32 %v73, 640
    %155 = vset.pattern.permute.xlu0 5
    %156 = vperm.xlu0 %155, %v154
    %v157 = vpop.permute.xlu0 %156
    %vm158 = vcmp.eq.s32.totalorder %v75, %v157
    %vm159 = vcmp.eq.s32.totalorder %v76, %v157
    %vm160 = vcmp.eq.s32.totalorder %v77, %v157
    %vm161 = vcmp.eq.s32.totalorder %v78, %v157
    %vm162 = vcmp.eq.s32.totalorder %v79, %v157
    %vm163 = vcmp.eq.s32.totalorder %v80, %v157
    %vm164 = vmor %vm148, %vm158
    %vm165 = vmor %vm149, %vm159
    %vm166 = vmor %vm150, %vm160
    %vm167 = vmor %vm151, %vm161
    %vm168 = vmor %vm152, %vm162
    %vm169 = vmor %vm153, %vm163
    %v170 = vsel %vm164, 1, 0
    %v171 = vsel %vm165, 1, 0
    %v172 = vsel %vm166, 1, 0
    %v173 = vsel %vm167, 1, 0
    %v174 = vsel %vm168, 1, 0
    %v175 = vsel %vm169, 1, 0
    %v176 = vcvt.s32.f32 %v170
    %v177 = vcvt.s32.f32 %v171
    %v178 = vcvt.s32.f32 %v172
    %v179 = vcvt.s32.f32 %v173
    %v180 = vcvt.s32.f32 %v174
    %v181 = vcvt.s32.f32 %v175
    %v182 = vpack.c.bf16 %v176, %v176
    %v183 = vpack.c.bf16 %v177, %v177
    %v184 = vpack.c.bf16 %v178, %v178
    %v185 = vpack.c.bf16 %v179, %v179
    %v186 = vpack.c.bf16 %v180, %v180
    %v187 = vpack.c.bf16 %v181, %v181
    %v188 = vld [vmem:[#allocation5] sm:$0xff]
    %v189 = vld [vmem:[#allocation5 + $0x8] sm:$0xff]
    %v190 = vld [vmem:[#allocation5 + $0x10] sm:$0xff]
    %v191 = vld [vmem:[#allocation5 + $0x18] sm:$0xff]
    %v192 = vld [vmem:[#allocation5 + $0x20] sm:$0xff]
    %v193 = vld [vmem:[#allocation5 + $0x28] sm:$0xff]
    %v194 = vld [vmem:[#allocation5 + $0x30] sm:$0xff]
    %v195 = vld [vmem:[#allocation5 + $0x38] sm:$0xff]
    %v196 = vld [vmem:[#allocation5 + $0x40] sm:$0xff]
    %v197 = vld [vmem:[#allocation5 + $0x48] sm:$0xff]
    %v198 = vld [vmem:[#allocation5 + $0x50] sm:$0xff]
    %v199 = vld [vmem:[#allocation5 + $0x58] sm:$0xff]
    %v200 = vld [vmem:[#allocation5 + $0x60] sm:$0xff]
    %v201 = vld [vmem:[#allocation5 + $0x68] sm:$0xff]
    %v202 = vld [vmem:[#allocation5 + $0x70] sm:$0xff]
    %v203 = vld [vmem:[#allocation5 + $0x78] sm:$0xff]
    %v204 = vld [vmem:[#allocation5 + $0x80] sm:$0xff]
    %v205 = vld [vmem:[#allocation5 + $0x88] sm:$0xff]
    %v206 = vld [vmem:[#allocation5 + $0x90] sm:$0xff]
    %v207 = vld [vmem:[#allocation5 + $0x98] sm:$0xff]
    %v208 = vld [vmem:[#allocation5 + $0xa0] sm:$0xff]
    %v209 = vld [vmem:[#allocation5 + $0xa8] sm:$0xff]
    %v210 = vld [vmem:[#allocation5 + $0xb0] sm:$0xff]
    %v211 = vld [vmem:[#allocation5 + $0xb8] sm:$0xff]
    %v212 = vld [vmem:[#allocation5 + $0xc0] sm:$0xff]
    %v213 = vld [vmem:[#allocation5 + $0xc8] sm:$0xff]
    %v214 = vld [vmem:[#allocation5 + $0xd0] sm:$0xff]
    %v215 = vld [vmem:[#allocation5 + $0xd8] sm:$0xff]
    %v216 = vld [vmem:[#allocation5 + $0xe0] sm:$0xff]
    %v217 = vld [vmem:[#allocation5 + $0xe8] sm:$0xff]
    %v218 = vld [vmem:[#allocation5 + $0xf0] sm:$0xff]
    %v219 = vld [vmem:[#allocation5 + $0xf8] sm:$0xff]
    %v220 = vld [vmem:[#allocation5 + $0x100] sm:$0xff]
    %v221 = vld [vmem:[#allocation5 + $0x108] sm:$0xff]
    %v222 = vld [vmem:[#allocation5 + $0x110] sm:$0xff]
    %v223 = vld [vmem:[#allocation5 + $0x118] sm:$0xff]
    %v224 = vld [vmem:[#allocation5 + $0x120] sm:$0xff]
    %v225 = vld [vmem:[#allocation5 + $0x128] sm:$0xff]
    %v226 = vld [vmem:[#allocation5 + $0x130] sm:$0xff]
    %v227 = vld [vmem:[#allocation5 + $0x138] sm:$0xff]
    %v228 = vld [vmem:[#allocation5 + $0x140] sm:$0xff]
    %v229 = vld [vmem:[#allocation5 + $0x148] sm:$0xff]
    %v230 = vld [vmem:[#allocation5 + $0x150] sm:$0xff]
    %v231 = vld [vmem:[#allocation5 + $0x158] sm:$0xff]
    %v232 = vld [vmem:[#allocation5 + $0x160] sm:$0xff]
    %v233 = vld [vmem:[#allocation5 + $0x168] sm:$0xff]
    %v234 = vld [vmem:[#allocation5 + $0x170] sm:$0xff]
    %v235 = vld [vmem:[#allocation5 + $0x178] sm:$0xff]
    %v236 = vld [vmem:[#allocation5 + $0x180] sm:$0xff]
    %v237 = vld [vmem:[#allocation5 + $0x188] sm:$0xff]
    %v238 = vld [vmem:[#allocation5 + $0x190] sm:$0xff]
    %v239 = vld [vmem:[#allocation5 + $0x198] sm:$0xff]
    %v240 = vld [vmem:[#allocation5 + $0x1a0] sm:$0xff]
    %v241 = vld [vmem:[#allocation5 + $0x1a8] sm:$0xff]
    %v242 = vld [vmem:[#allocation5 + $0x1b0] sm:$0xff]
    %v243 = vld [vmem:[#allocation5 + $0x1b8] sm:$0xff]
    %v244 = vld [vmem:[#allocation5 + $0x1c0] sm:$0xff]
    %v245 = vld [vmem:[#allocation5 + $0x1c8] sm:$0xff]
    %v246 = vld [vmem:[#allocation5 + $0x1d0] sm:$0xff]
    %v247 = vld [vmem:[#allocation5 + $0x1d8] sm:$0xff]
    %v248 = vld [vmem:[#allocation5 + $0x1e0] sm:$0xff]
    %v249 = vld [vmem:[#allocation5 + $0x1e8] sm:$0xff]
    %v250 = vld [vmem:[#allocation5 + $0x1f0] sm:$0xff]
    %v251 = vld [vmem:[#allocation5 + $0x1f8] sm:$0xff]
    %v252 = vld [vmem:[#allocation5 + $0x200] sm:$0xff]
    %v253 = vld [vmem:[#allocation5 + $0x208] sm:$0xff]
    %v254 = vld [vmem:[#allocation5 + $0x210] sm:$0xff]
    %v255 = vld [vmem:[#allocation5 + $0x218] sm:$0xff]
    %v256 = vld [vmem:[#allocation5 + $0x220] sm:$0xff]
    %v257 = vld [vmem:[#allocation5 + $0x228] sm:$0xff]
    %v258 = vld [vmem:[#allocation5 + $0x230] sm:$0xff]
    %v259 = vld [vmem:[#allocation5 + $0x238] sm:$0xff]
    %v260 = vld [vmem:[#allocation5 + $0x240] sm:$0xff]
    %v261 = vld [vmem:[#allocation5 + $0x248] sm:$0xff]
    %v262 = vld [vmem:[#allocation5 + $0x250] sm:$0xff]
    %v263 = vld [vmem:[#allocation5 + $0x258] sm:$0xff]
    %v264 = vld [vmem:[#allocation5 + $0x260] sm:$0xff]
    %v265 = vld [vmem:[#allocation5 + $0x268] sm:$0xff]
    %v266 = vld [vmem:[#allocation5 + $0x270] sm:$0xff]
    %v267 = vld [vmem:[#allocation5 + $0x278] sm:$0xff]
    %v268 = vld [vmem:[#allocation5 + $0x280] sm:$0xff]
    %v269 = vld [vmem:[#allocation5 + $0x288] sm:$0xff]
    %v270 = vld [vmem:[#allocation5 + $0x290] sm:$0xff]
    %v271 = vld [vmem:[#allocation5 + $0x298] sm:$0xff]
    %v272 = vld [vmem:[#allocation5 + $0x2a0] sm:$0xff]
    %v273 = vld [vmem:[#allocation5 + $0x2a8] sm:$0xff]
    %v274 = vld [vmem:[#allocation5 + $0x2b0] sm:$0xff]
    %v275 = vld [vmem:[#allocation5 + $0x2b8] sm:$0xff]
    %v276 = vld [vmem:[#allocation5 + $0x2c0] sm:$0xff]
    %v277 = vld [vmem:[#allocation5 + $0x2c8] sm:$0xff]
    %v278 = vld [vmem:[#allocation5 + $0x2d0] sm:$0xff]
    %v279 = vld [vmem:[#allocation5 + $0x2d8] sm:$0xff]
    %v280 = vld [vmem:[#allocation5 + $0x2e0] sm:$0xff]
    %v281 = vld [vmem:[#allocation5 + $0x2e8] sm:$0xff]
    %v282 = vld [vmem:[#allocation5 + $0x2f0] sm:$0xff]
    %v283 = vld [vmem:[#allocation5 + $0x2f8] sm:$0xff]
    %v284 = vld [vmem:[#allocation5 + $0x300] sm:$0xff]
    %v285 = vld [vmem:[#allocation5 + $0x308] sm:$0xff]
    %v286 = vld [vmem:[#allocation5 + $0x310] sm:$0xff]
    %v287 = vld [vmem:[#allocation5 + $0x318] sm:$0xff]
    %v288 = vld [vmem:[#allocation5 + $0x320] sm:$0xff]
    %v289 = vld [vmem:[#allocation5 + $0x328] sm:$0xff]
    %v290 = vld [vmem:[#allocation5 + $0x330] sm:$0xff]
    %v291 = vld [vmem:[#allocation5 + $0x338] sm:$0xff]
    %v292 = vld [vmem:[#allocation5 + $0x340] sm:$0xff]
    %v293 = vld [vmem:[#allocation5 + $0x348] sm:$0xff]
    %v294 = vld [vmem:[#allocation5 + $0x350] sm:$0xff]
    %v295 = vld [vmem:[#allocation5 + $0x358] sm:$0xff]
    %v296 = vld [vmem:[#allocation5 + $0x360] sm:$0xff]
    %v297 = vld [vmem:[#allocation5 + $0x368] sm:$0xff]
    %v298 = vld [vmem:[#allocation5 + $0x370] sm:$0xff]
    %v299 = vld [vmem:[#allocation5 + $0x378] sm:$0xff]
    %v300 = vld [vmem:[#allocation5 + $0x380] sm:$0xff]
    %v301 = vld [vmem:[#allocation5 + $0x388] sm:$0xff]
    %v302 = vld [vmem:[#allocation5 + $0x390] sm:$0xff]
    %v303 = vld [vmem:[#allocation5 + $0x398] sm:$0xff]
    %v304 = vld [vmem:[#allocation5 + $0x3a0] sm:$0xff]
    %v305 = vld [vmem:[#allocation5 + $0x3a8] sm:$0xff]
    %v306 = vld [vmem:[#allocation5 + $0x3b0] sm:$0xff]
    %v307 = vld [vmem:[#allocation5 + $0x3b8] sm:$0xff]
    %v308 = vld [vmem:[#allocation5 + $0x3c0] sm:$0xff]
    %v309 = vld [vmem:[#allocation5 + $0x3c8] sm:$0xff]
    %v310 = vld [vmem:[#allocation5 + $0x3d0] sm:$0xff]
    %v311 = vld [vmem:[#allocation5 + $0x3d8] sm:$0xff]
    %v312 = vld [vmem:[#allocation5 + $0x3e0] sm:$0xff]
    %v313 = vld [vmem:[#allocation5 + $0x3e8] sm:$0xff]
    %v314 = vld [vmem:[#allocation5 + $0x3f0] sm:$0xff]
    %v315 = vld [vmem:[#allocation5 + $0x3f8] sm:$0xff]
    %v316 = vld [vmem:[#allocation5 + $0x400] sm:$0xff]
    %v317 = vld [vmem:[#allocation5 + $0x408] sm:$0xff]
    %v318 = vld [vmem:[#allocation5 + $0x410] sm:$0xff]
    %v319 = vld [vmem:[#allocation5 + $0x418] sm:$0xff]
    %v320 = vld [vmem:[#allocation5 + $0x420] sm:$0xff]
    %v321 = vld [vmem:[#allocation5 + $0x428] sm:$0xff]
    %v322 = vld [vmem:[#allocation5 + $0x430] sm:$0xff]
    %v323 = vld [vmem:[#allocation5 + $0x438] sm:$0xff]
    %v324 = vld [vmem:[#allocation5 + $0x440] sm:$0xff]
    %v325 = vld [vmem:[#allocation5 + $0x448] sm:$0xff]
    %v326 = vld [vmem:[#allocation5 + $0x450] sm:$0xff]
    %v327 = vld [vmem:[#allocation5 + $0x458] sm:$0xff]
    %v328 = vld [vmem:[#allocation5 + $0x460] sm:$0xff]
    %v329 = vld [vmem:[#allocation5 + $0x468] sm:$0xff]
    %v330 = vld [vmem:[#allocation5 + $0x470] sm:$0xff]
    %v331 = vld [vmem:[#allocation5 + $0x478] sm:$0xff]
    %v332 = vld [vmem:[#allocation5 + $0x480] sm:$0xff]
    %v333 = vld [vmem:[#allocation5 + $0x488] sm:$0xff]
    %v334 = vld [vmem:[#allocation5 + $0x490] sm:$0xff]
    %v335 = vld [vmem:[#allocation5 + $0x498] sm:$0xff]
    %v336 = vld [vmem:[#allocation5 + $0x4a0] sm:$0xff]
    %v337 = vld [vmem:[#allocation5 + $0x4a8] sm:$0xff]
    %v338 = vld [vmem:[#allocation5 + $0x4b0] sm:$0xff]
    %v339 = vld [vmem:[#allocation5 + $0x4b8] sm:$0xff]
    %v340 = vld [vmem:[#allocation5 + $0x4c0] sm:$0xff]
    %v341 = vld [vmem:[#allocation5 + $0x4c8] sm:$0xff]
    %v342 = vld [vmem:[#allocation5 + $0x4d0] sm:$0xff]
    %v343 = vld [vmem:[#allocation5 + $0x4d8] sm:$0xff]
    %v344 = vld [vmem:[#allocation5 + $0x4e0] sm:$0xff]
    %v345 = vld [vmem:[#allocation5 + $0x4e8] sm:$0xff]
    %v346 = vld [vmem:[#allocation5 + $0x4f0] sm:$0xff]
    %v347 = vld [vmem:[#allocation5 + $0x4f8] sm:$0xff]
    %v348 = vld [vmem:[#allocation5 + $0x500] sm:$0xff]
    %v349 = vld [vmem:[#allocation5 + $0x508] sm:$0xff]
    %v350 = vld [vmem:[#allocation5 + $0x510] sm:$0xff]
    %v351 = vld [vmem:[#allocation5 + $0x518] sm:$0xff]
    %v352 = vld [vmem:[#allocation5 + $0x520] sm:$0xff]
    %v353 = vld [vmem:[#allocation5 + $0x528] sm:$0xff]
    %v354 = vld [vmem:[#allocation5 + $0x530] sm:$0xff]
    %v355 = vld [vmem:[#allocation5 + $0x538] sm:$0xff]
    %v356 = vld [vmem:[#allocation5 + $0x540] sm:$0xff]
    %v357 = vld [vmem:[#allocation5 + $0x548] sm:$0xff]
    %v358 = vld [vmem:[#allocation5 + $0x550] sm:$0xff]
    %v359 = vld [vmem:[#allocation5 + $0x558] sm:$0xff]
    %v360 = vld [vmem:[#allocation5 + $0x560] sm:$0xff]
    %v361 = vld [vmem:[#allocation5 + $0x568] sm:$0xff]
    %v362 = vld [vmem:[#allocation5 + $0x570] sm:$0xff]
    %v363 = vld [vmem:[#allocation5 + $0x578] sm:$0xff]
    %v364 = vld [vmem:[#allocation5 + $0x580] sm:$0xff]
    %v365 = vld [vmem:[#allocation5 + $0x588] sm:$0xff]
    %v366 = vld [vmem:[#allocation5 + $0x590] sm:$0xff]
    %v367 = vld [vmem:[#allocation5 + $0x598] sm:$0xff]
    %v368 = vld [vmem:[#allocation5 + $0x5a0] sm:$0xff]
    %v369 = vld [vmem:[#allocation5 + $0x5a8] sm:$0xff]
    %v370 = vld [vmem:[#allocation5 + $0x5b0] sm:$0xff]
    %v371 = vld [vmem:[#allocation5 + $0x5b8] sm:$0xff]
    %v372 = vld [vmem:[#allocation5 + $0x5c0] sm:$0xff]
    %v373 = vld [vmem:[#allocation5 + $0x5c8] sm:$0xff]
    %v374 = vld [vmem:[#allocation5 + $0x5d0] sm:$0xff]
    %v375 = vld [vmem:[#allocation5 + $0x5d8] sm:$0xff]
    %v376 = vld [vmem:[#allocation5 + $0x5e0] sm:$0xff]
    %v377 = vld [vmem:[#allocation5 + $0x5e8] sm:$0xff]
    %v378 = vld [vmem:[#allocation5 + $0x5f0] sm:$0xff]
    %v379 = vld [vmem:[#allocation5 + $0x5f8] sm:$0xff]
    %v380 = vld [vmem:[#allocation7] sm:$0xf]
    %v382 = vlaneseq
    %v383 = vshrl.u32 %v382, 7
    %v384 = vsub.s32 0, %v383
    %v385 = vrot.slane %v380, %v384
    %v386 = vlaneseq
    %v387 = vshrl.u32 %v386, 7
    %v388 = vsub.s32 1, %v387
    %v389 = vrot.slane %v380, %v388
    %v390 = vlaneseq
    %v391 = vshrl.u32 %v390, 7
    %v392 = vsub.s32 2, %v391
    %v393 = vrot.slane %v380, %v392
    %v394 = vlaneseq
    %v395 = vshrl.u32 %v394, 7
    %v396 = vsub.s32 3, %v395
    %v397 = vrot.slane %v380, %v396
    %v594 = vunpack.c.l.b16 %v188
    %v595 = vunpack.c.h.b16 %v188
    %v596 = vunpack.c.l.b16 %v189
    %v597 = vunpack.c.h.b16 %v189
    %v598 = vunpack.c.l.b16 %v190
    %v599 = vunpack.c.h.b16 %v190
    %v600 = vunpack.c.l.b16 %v191
    %v601 = vunpack.c.h.b16 %v191
    %v602 = vunpack.c.l.b16 %v192
    %v603 = vunpack.c.h.b16 %v192
    %v604 = vunpack.c.l.b16 %v193
    %v605 = vunpack.c.h.b16 %v193
    %v606 = vunpack.c.l.b16 %v194
    %v607 = vunpack.c.h.b16 %v194
    %v608 = vunpack.c.l.b16 %v195
    %v609 = vunpack.c.h.b16 %v195
    %v610 = vunpack.c.l.b16 %v196
    %v611 = vunpack.c.h.b16 %v196
    %v612 = vunpack.c.l.b16 %v197
    %v613 = vunpack.c.h.b16 %v197
    %v614 = vunpack.c.l.b16 %v198
    %v615 = vunpack.c.h.b16 %v198
    %v616 = vunpack.c.l.b16 %v199
    %v617 = vunpack.c.h.b16 %v199
    %v618 = vunpack.c.l.b16 %v200
    %v619 = vunpack.c.h.b16 %v200
    %v620 = vunpack.c.l.b16 %v201
    %v621 = vunpack.c.h.b16 %v201
    %v622 = vunpack.c.l.b16 %v202
    %v623 = vunpack.c.h.b16 %v202
    %v624 = vunpack.c.l.b16 %v203
    %v625 = vunpack.c.h.b16 %v203
    %v626 = vunpack.c.l.b16 %v204
    %v627 = vunpack.c.h.b16 %v204
    %v628 = vunpack.c.l.b16 %v205
    %v629 = vunpack.c.h.b16 %v205
    %v630 = vunpack.c.l.b16 %v206
    %v631 = vunpack.c.h.b16 %v206
    %v632 = vunpack.c.l.b16 %v207
    %v633 = vunpack.c.h.b16 %v207
    %v634 = vunpack.c.l.b16 %v208
    %v635 = vunpack.c.h.b16 %v208
    %v636 = vunpack.c.l.b16 %v209
    %v637 = vunpack.c.h.b16 %v209
    %v638 = vunpack.c.l.b16 %v210
    %v639 = vunpack.c.h.b16 %v210
    %v640 = vunpack.c.l.b16 %v211
    %v641 = vunpack.c.h.b16 %v211
    %v642 = vunpack.c.l.b16 %v212
    %v643 = vunpack.c.h.b16 %v212
    %v644 = vunpack.c.l.b16 %v213
    %v645 = vunpack.c.h.b16 %v213
    %v646 = vunpack.c.l.b16 %v214
    %v647 = vunpack.c.h.b16 %v214
    %v648 = vunpack.c.l.b16 %v215
    %v649 = vunpack.c.h.b16 %v215
    %v650 = vunpack.c.l.b16 %v216
    %v651 = vunpack.c.h.b16 %v216
    %v652 = vunpack.c.l.b16 %v217
    %v653 = vunpack.c.h.b16 %v217
    %v654 = vunpack.c.l.b16 %v218
    %v655 = vunpack.c.h.b16 %v218
    %v656 = vunpack.c.l.b16 %v219
    %v657 = vunpack.c.h.b16 %v219
    %v658 = vunpack.c.l.b16 %v220
    %v659 = vunpack.c.h.b16 %v220
    %v660 = vunpack.c.l.b16 %v221
    %v661 = vunpack.c.h.b16 %v221
    %v662 = vunpack.c.l.b16 %v222
    %v663 = vunpack.c.h.b16 %v222
    %v664 = vunpack.c.l.b16 %v223
    %v665 = vunpack.c.h.b16 %v223
    %v666 = vunpack.c.l.b16 %v224
    %v667 = vunpack.c.h.b16 %v224
    %v668 = vunpack.c.l.b16 %v225
    %v669 = vunpack.c.h.b16 %v225
    %v670 = vunpack.c.l.b16 %v226
    %v671 = vunpack.c.h.b16 %v226
    %v672 = vunpack.c.l.b16 %v227
    %v673 = vunpack.c.h.b16 %v227
    %v674 = vunpack.c.l.b16 %v228
    %v675 = vunpack.c.h.b16 %v228
    %v676 = vunpack.c.l.b16 %v229
    %v677 = vunpack.c.h.b16 %v229
    %v678 = vunpack.c.l.b16 %v230
    %v679 = vunpack.c.h.b16 %v230
    %v680 = vunpack.c.l.b16 %v231
    %v681 = vunpack.c.h.b16 %v231
    %v682 = vunpack.c.l.b16 %v232
    %v683 = vunpack.c.h.b16 %v232
    %v684 = vunpack.c.l.b16 %v233
    %v685 = vunpack.c.h.b16 %v233
    %v686 = vunpack.c.l.b16 %v234
    %v687 = vunpack.c.h.b16 %v234
    %v688 = vunpack.c.l.b16 %v235
    %v689 = vunpack.c.h.b16 %v235
    %v690 = vunpack.c.l.b16 %v236
    %v691 = vunpack.c.h.b16 %v236
    %v692 = vunpack.c.l.b16 %v237
    %v693 = vunpack.c.h.b16 %v237
    %v694 = vunpack.c.l.b16 %v238
    %v695 = vunpack.c.h.b16 %v238
    %v696 = vunpack.c.l.b16 %v239
    %v697 = vunpack.c.h.b16 %v239
    %v698 = vunpack.c.l.b16 %v240
    %v699 = vunpack.c.h.b16 %v240
    %v700 = vunpack.c.l.b16 %v241
    %v701 = vunpack.c.h.b16 %v241
    %v702 = vunpack.c.l.b16 %v242
    %v703 = vunpack.c.h.b16 %v242
    %v704 = vunpack.c.l.b16 %v243
    %v705 = vunpack.c.h.b16 %v243
    %v706 = vunpack.c.l.b16 %v244
    %v707 = vunpack.c.h.b16 %v244
    %v708 = vunpack.c.l.b16 %v245
    %v709 = vunpack.c.h.b16 %v245
    %v710 = vunpack.c.l.b16 %v246
    %v711 = vunpack.c.h.b16 %v246
    %v712 = vunpack.c.l.b16 %v247
    %v713 = vunpack.c.h.b16 %v247
    %v714 = vunpack.c.l.b16 %v248
    %v715 = vunpack.c.h.b16 %v248
    %v716 = vunpack.c.l.b16 %v249
    %v717 = vunpack.c.h.b16 %v249
    %v718 = vunpack.c.l.b16 %v250
    %v719 = vunpack.c.h.b16 %v250
    %v720 = vunpack.c.l.b16 %v251
    %v721 = vunpack.c.h.b16 %v251
    %v722 = vunpack.c.l.b16 %v252
    %v723 = vunpack.c.h.b16 %v252
    %v724 = vunpack.c.l.b16 %v253
    %v725 = vunpack.c.h.b16 %v253
    %v726 = vunpack.c.l.b16 %v254
    %v727 = vunpack.c.h.b16 %v254
    %v728 = vunpack.c.l.b16 %v255
    %v729 = vunpack.c.h.b16 %v255
    %v730 = vunpack.c.l.b16 %v256
    %v731 = vunpack.c.h.b16 %v256
    %v732 = vunpack.c.l.b16 %v257
    %v733 = vunpack.c.h.b16 %v257
    %v734 = vunpack.c.l.b16 %v258
    %v735 = vunpack.c.h.b16 %v258
    %v736 = vunpack.c.l.b16 %v259
    %v737 = vunpack.c.h.b16 %v259
    %v738 = vunpack.c.l.b16 %v260
    %v739 = vunpack.c.h.b16 %v260
    %v740 = vunpack.c.l.b16 %v261
    %v741 = vunpack.c.h.b16 %v261
    %v742 = vunpack.c.l.b16 %v262
    %v743 = vunpack.c.h.b16 %v262
    %v744 = vunpack.c.l.b16 %v263
    %v745 = vunpack.c.h.b16 %v263
    %v746 = vunpack.c.l.b16 %v264
    %v747 = vunpack.c.h.b16 %v264
    %v748 = vunpack.c.l.b16 %v265
    %v749 = vunpack.c.h.b16 %v265
    %v750 = vunpack.c.l.b16 %v266
    %v751 = vunpack.c.h.b16 %v266
    %v752 = vunpack.c.l.b16 %v267
    %v753 = vunpack.c.h.b16 %v267
    %v754 = vunpack.c.l.b16 %v268
    %v755 = vunpack.c.h.b16 %v268
    %v756 = vunpack.c.l.b16 %v269
    %v757 = vunpack.c.h.b16 %v269
    %v758 = vunpack.c.l.b16 %v270
    %v759 = vunpack.c.h.b16 %v270
    %v760 = vunpack.c.l.b16 %v271
    %v761 = vunpack.c.h.b16 %v271
    %v762 = vunpack.c.l.b16 %v272
    %v763 = vunpack.c.h.b16 %v272
    %v764 = vunpack.c.l.b16 %v273
    %v765 = vunpack.c.h.b16 %v273
    %v766 = vunpack.c.l.b16 %v274
    %v767 = vunpack.c.h.b16 %v274
    %v768 = vunpack.c.l.b16 %v275
    %v769 = vunpack.c.h.b16 %v275
    %v770 = vunpack.c.l.b16 %v276
    %v771 = vunpack.c.h.b16 %v276
    %v772 = vunpack.c.l.b16 %v277
    %v773 = vunpack.c.h.b16 %v277
    %v774 = vunpack.c.l.b16 %v278
    %v775 = vunpack.c.h.b16 %v278
    %v776 = vunpack.c.l.b16 %v279
    %v777 = vunpack.c.h.b16 %v279
    %v778 = vunpack.c.l.b16 %v280
    %v779 = vunpack.c.h.b16 %v280
    %v780 = vunpack.c.l.b16 %v281
    %v781 = vunpack.c.h.b16 %v281
    %v782 = vunpack.c.l.b16 %v282
    %v783 = vunpack.c.h.b16 %v282
    %v784 = vunpack.c.l.b16 %v283
    %v785 = vunpack.c.h.b16 %v283
    %v786 = vunpack.c.l.b16 %v284
    %v787 = vunpack.c.h.b16 %v284
    %v788 = vunpack.c.l.b16 %v285
    %v789 = vunpack.c.h.b16 %v285
    %v790 = vunpack.c.l.b16 %v286
    %v791 = vunpack.c.h.b16 %v286
    %v792 = vunpack.c.l.b16 %v287
    %v793 = vunpack.c.h.b16 %v287
    %v794 = vunpack.c.l.b16 %v288
    %v795 = vunpack.c.h.b16 %v288
    %v796 = vunpack.c.l.b16 %v289
    %v797 = vunpack.c.h.b16 %v289
    %v798 = vunpack.c.l.b16 %v290
    %v799 = vunpack.c.h.b16 %v290
    %v800 = vunpack.c.l.b16 %v291
    %v801 = vunpack.c.h.b16 %v291
    %v802 = vunpack.c.l.b16 %v292
    %v803 = vunpack.c.h.b16 %v292
    %v804 = vunpack.c.l.b16 %v293
    %v805 = vunpack.c.h.b16 %v293
    %v806 = vunpack.c.l.b16 %v294
    %v807 = vunpack.c.h.b16 %v294
    %v808 = vunpack.c.l.b16 %v295
    %v809 = vunpack.c.h.b16 %v295
    %v810 = vunpack.c.l.b16 %v296
    %v811 = vunpack.c.h.b16 %v296
    %v812 = vunpack.c.l.b16 %v297
    %v813 = vunpack.c.h.b16 %v297
    %v814 = vunpack.c.l.b16 %v298
    %v815 = vunpack.c.h.b16 %v298
    %v816 = vunpack.c.l.b16 %v299
    %v817 = vunpack.c.h.b16 %v299
    %v818 = vunpack.c.l.b16 %v300
    %v819 = vunpack.c.h.b16 %v300
    %v820 = vunpack.c.l.b16 %v301
    %v821 = vunpack.c.h.b16 %v301
    %v822 = vunpack.c.l.b16 %v302
    %v823 = vunpack.c.h.b16 %v302
    %v824 = vunpack.c.l.b16 %v303
    %v825 = vunpack.c.h.b16 %v303
    %v826 = vunpack.c.l.b16 %v304
    %v827 = vunpack.c.h.b16 %v304
    %v828 = vunpack.c.l.b16 %v305
    %v829 = vunpack.c.h.b16 %v305
    %v830 = vunpack.c.l.b16 %v306
    %v831 = vunpack.c.h.b16 %v306
    %v832 = vunpack.c.l.b16 %v307
    %v833 = vunpack.c.h.b16 %v307
    %v834 = vunpack.c.l.b16 %v308
    %v835 = vunpack.c.h.b16 %v308
    %v836 = vunpack.c.l.b16 %v309
    %v837 = vunpack.c.h.b16 %v309
    %v838 = vunpack.c.l.b16 %v310
    %v839 = vunpack.c.h.b16 %v310
    %v840 = vunpack.c.l.b16 %v311
    %v841 = vunpack.c.h.b16 %v311
    %v842 = vunpack.c.l.b16 %v312
    %v843 = vunpack.c.h.b16 %v312
    %v844 = vunpack.c.l.b16 %v313
    %v845 = vunpack.c.h.b16 %v313
    %v846 = vunpack.c.l.b16 %v314
    %v847 = vunpack.c.h.b16 %v314
    %v848 = vunpack.c.l.b16 %v315
    %v849 = vunpack.c.h.b16 %v315
    %v850 = vunpack.c.l.b16 %v316
    %v851 = vunpack.c.h.b16 %v316
    %v852 = vunpack.c.l.b16 %v317
    %v853 = vunpack.c.h.b16 %v317
    %v854 = vunpack.c.l.b16 %v318
    %v855 = vunpack.c.h.b16 %v318
    %v856 = vunpack.c.l.b16 %v319
    %v857 = vunpack.c.h.b16 %v319
    %v858 = vunpack.c.l.b16 %v320
    %v859 = vunpack.c.h.b16 %v320
    %v860 = vunpack.c.l.b16 %v321
    %v861 = vunpack.c.h.b16 %v321
    %v862 = vunpack.c.l.b16 %v322
    %v863 = vunpack.c.h.b16 %v322
    %v864 = vunpack.c.l.b16 %v323
    %v865 = vunpack.c.h.b16 %v323
    %v866 = vunpack.c.l.b16 %v324
    %v867 = vunpack.c.h.b16 %v324
    %v868 = vunpack.c.l.b16 %v325
    %v869 = vunpack.c.h.b16 %v325
    %v870 = vunpack.c.l.b16 %v326
    %v871 = vunpack.c.h.b16 %v326
    %v872 = vunpack.c.l.b16 %v327
    %v873 = vunpack.c.h.b16 %v327
    %v874 = vunpack.c.l.b16 %v328
    %v875 = vunpack.c.h.b16 %v328
    %v876 = vunpack.c.l.b16 %v329
    %v877 = vunpack.c.h.b16 %v329
    %v878 = vunpack.c.l.b16 %v330
    %v879 = vunpack.c.h.b16 %v330
    %v880 = vunpack.c.l.b16 %v331
    %v881 = vunpack.c.h.b16 %v331
    %v882 = vunpack.c.l.b16 %v332
    %v883 = vunpack.c.h.b16 %v332
    %v884 = vunpack.c.l.b16 %v333
    %v885 = vunpack.c.h.b16 %v333
    %v886 = vunpack.c.l.b16 %v334
    %v887 = vunpack.c.h.b16 %v334
    %v888 = vunpack.c.l.b16 %v335
    %v889 = vunpack.c.h.b16 %v335
    %v890 = vunpack.c.l.b16 %v336
    %v891 = vunpack.c.h.b16 %v336
    %v892 = vunpack.c.l.b16 %v337
    %v893 = vunpack.c.h.b16 %v337
    %v894 = vunpack.c.l.b16 %v338
    %v895 = vunpack.c.h.b16 %v338
    %v896 = vunpack.c.l.b16 %v339
    %v897 = vunpack.c.h.b16 %v339
    %v898 = vunpack.c.l.b16 %v340
    %v899 = vunpack.c.h.b16 %v340
    %v900 = vunpack.c.l.b16 %v341
    %v901 = vunpack.c.h.b16 %v341
    %v902 = vunpack.c.l.b16 %v342
    %v903 = vunpack.c.h.b16 %v342
    %v904 = vunpack.c.l.b16 %v343
    %v905 = vunpack.c.h.b16 %v343
    %v906 = vunpack.c.l.b16 %v344
    %v907 = vunpack.c.h.b16 %v344
    %v908 = vunpack.c.l.b16 %v345
    %v909 = vunpack.c.h.b16 %v345
    %v910 = vunpack.c.l.b16 %v346
    %v911 = vunpack.c.h.b16 %v346
    %v912 = vunpack.c.l.b16 %v347
    %v913 = vunpack.c.h.b16 %v347
    %v914 = vunpack.c.l.b16 %v348
    %v915 = vunpack.c.h.b16 %v348
    %v916 = vunpack.c.l.b16 %v349
    %v917 = vunpack.c.h.b16 %v349
    %v918 = vunpack.c.l.b16 %v350
    %v919 = vunpack.c.h.b16 %v350
    %v920 = vunpack.c.l.b16 %v351
    %v921 = vunpack.c.h.b16 %v351
    %v922 = vunpack.c.l.b16 %v352
    %v923 = vunpack.c.h.b16 %v352
    %v924 = vunpack.c.l.b16 %v353
    %v925 = vunpack.c.h.b16 %v353
    %v926 = vunpack.c.l.b16 %v354
    %v927 = vunpack.c.h.b16 %v354
    %v928 = vunpack.c.l.b16 %v355
    %v929 = vunpack.c.h.b16 %v355
    %v930 = vunpack.c.l.b16 %v356
    %v931 = vunpack.c.h.b16 %v356
    %v932 = vunpack.c.l.b16 %v357
    %v933 = vunpack.c.h.b16 %v357
    %v934 = vunpack.c.l.b16 %v358
    %v935 = vunpack.c.h.b16 %v358
    %v936 = vunpack.c.l.b16 %v359
    %v937 = vunpack.c.h.b16 %v359
    %v938 = vunpack.c.l.b16 %v360
    %v939 = vunpack.c.h.b16 %v360
    %v940 = vunpack.c.l.b16 %v361
    %v941 = vunpack.c.h.b16 %v361
    %v942 = vunpack.c.l.b16 %v362
    %v943 = vunpack.c.h.b16 %v362
    %v944 = vunpack.c.l.b16 %v363
    %v945 = vunpack.c.h.b16 %v363
    %v946 = vunpack.c.l.b16 %v364
    %v947 = vunpack.c.h.b16 %v364
    %v948 = vunpack.c.l.b16 %v365
    %v949 = vunpack.c.h.b16 %v365
    %v950 = vunpack.c.l.b16 %v366
    %v951 = vunpack.c.h.b16 %v366
    %v952 = vunpack.c.l.b16 %v367
    %v953 = vunpack.c.h.b16 %v367
    %v954 = vunpack.c.l.b16 %v368
    %v955 = vunpack.c.h.b16 %v368
    %v956 = vunpack.c.l.b16 %v369
    %v957 = vunpack.c.h.b16 %v369
    %v958 = vunpack.c.l.b16 %v370
    %v959 = vunpack.c.h.b16 %v370
    %v960 = vunpack.c.l.b16 %v371
    %v961 = vunpack.c.h.b16 %v371
    %v962 = vunpack.c.l.b16 %v372
    %v963 = vunpack.c.h.b16 %v372
    %v964 = vunpack.c.l.b16 %v373
    %v965 = vunpack.c.h.b16 %v373
    %v966 = vunpack.c.l.b16 %v374
    %v967 = vunpack.c.h.b16 %v374
    %v968 = vunpack.c.l.b16 %v375
    %v969 = vunpack.c.h.b16 %v375
    %v970 = vunpack.c.l.b16 %v376
    %v971 = vunpack.c.h.b16 %v376
    %v972 = vunpack.c.l.b16 %v377
    %v973 = vunpack.c.h.b16 %v377
    %v974 = vunpack.c.l.b16 %v378
    %v975 = vunpack.c.h.b16 %v378
    %v976 = vunpack.c.l.b16 %v379
    %v977 = vunpack.c.h.b16 %v379
    %v978 = vpack.c.b16 %v598, %v594
    %v979 = vpack.c.b16 %v599, %v595
    %v980 = vpack.c.b16 %v600, %v596
    %v981 = vpack.c.b16 %v601, %v597
    %v982 = vpack.c.b16 %v606, %v602
    %v983 = vpack.c.b16 %v607, %v603
    %v984 = vpack.c.b16 %v608, %v604
    %v985 = vpack.c.b16 %v609, %v605
    %v986 = vpack.c.b16 %v614, %v610
    %v987 = vpack.c.b16 %v615, %v611
    %v988 = vpack.c.b16 %v616, %v612
    %v989 = vpack.c.b16 %v617, %v613
    %v990 = vpack.c.b16 %v622, %v618
    %v991 = vpack.c.b16 %v623, %v619
    %v992 = vpack.c.b16 %v624, %v620
    %v993 = vpack.c.b16 %v625, %v621
    %v994 = vpack.c.b16 %v630, %v626
    %v995 = vpack.c.b16 %v631, %v627
    %v996 = vpack.c.b16 %v632, %v628
    %v997 = vpack.c.b16 %v633, %v629
    %v998 = vpack.c.b16 %v638, %v634
    %v999 = vpack.c.b16 %v639, %v635
    %v1000 = vpack.c.b16 %v640, %v636
    %v1001 = vpack.c.b16 %v641, %v637
    %v1002 = vpack.c.b16 %v646, %v642
    %v1003 = vpack.c.b16 %v647, %v643
    %v1004 = vpack.c.b16 %v648, %v644
    %v1005 = vpack.c.b16 %v649, %v645
    %v1006 = vpack.c.b16 %v654, %v650
    %v1007 = vpack.c.b16 %v655, %v651
    %v1008 = vpack.c.b16 %v656, %v652
    %v1009 = vpack.c.b16 %v657, %v653
    %v1010 = vpack.c.b16 %v662, %v658
    %v1011 = vpack.c.b16 %v663, %v659
    %v1012 = vpack.c.b16 %v664, %v660
    %v1013 = vpack.c.b16 %v665, %v661
    %v1014 = vpack.c.b16 %v670, %v666
    %v1015 = vpack.c.b16 %v671, %v667
    %v1016 = vpack.c.b16 %v672, %v668
    %v1017 = vpack.c.b16 %v673, %v669
    %v1018 = vpack.c.b16 %v678, %v674
    %v1019 = vpack.c.b16 %v679, %v675
    %v1020 = vpack.c.b16 %v680, %v676
    %v1021 = vpack.c.b16 %v681, %v677
    %v1022 = vpack.c.b16 %v686, %v682
    %v1023 = vpack.c.b16 %v687, %v683
    %v1024 = vpack.c.b16 %v688, %v684
    %v1025 = vpack.c.b16 %v689, %v685
    %v1026 = vpack.c.b16 %v694, %v690
    %v1027 = vpack.c.b16 %v695, %v691
    %v1028 = vpack.c.b16 %v696, %v692
    %v1029 = vpack.c.b16 %v697, %v693
    %v1030 = vpack.c.b16 %v702, %v698
    %v1031 = vpack.c.b16 %v703, %v699
    %v1032 = vpack.c.b16 %v704, %v700
    %v1033 = vpack.c.b16 %v705, %v701
    %v1034 = vpack.c.b16 %v710, %v706
    %v1035 = vpack.c.b16 %v711, %v707
    %v1036 = vpack.c.b16 %v712, %v708
    %v1037 = vpack.c.b16 %v713, %v709
    %v1038 = vpack.c.b16 %v718, %v714
    %v1039 = vpack.c.b16 %v719, %v715
    %v1040 = vpack.c.b16 %v720, %v716
    %v1041 = vpack.c.b16 %v721, %v717
    %v1042 = vpack.c.b16 %v726, %v722
    %v1043 = vpack.c.b16 %v727, %v723
    %v1044 = vpack.c.b16 %v728, %v724
    %v1045 = vpack.c.b16 %v729, %v725
    %v1046 = vpack.c.b16 %v734, %v730
    %v1047 = vpack.c.b16 %v735, %v731
    %v1048 = vpack.c.b16 %v736, %v732
    %v1049 = vpack.c.b16 %v737, %v733
    %v1050 = vpack.c.b16 %v742, %v738
    %v1051 = vpack.c.b16 %v743, %v739
    %v1052 = vpack.c.b16 %v744, %v740
    %v1053 = vpack.c.b16 %v745, %v741
    %v1054 = vpack.c.b16 %v750, %v746
    %v1055 = vpack.c.b16 %v751, %v747
    %v1056 = vpack.c.b16 %v752, %v748
    %v1057 = vpack.c.b16 %v753, %v749
    %v1058 = vpack.c.b16 %v758, %v754
    %v1059 = vpack.c.b16 %v759, %v755
    %v1060 = vpack.c.b16 %v760, %v756
    %v1061 = vpack.c.b16 %v761, %v757
    %v1062 = vpack.c.b16 %v766, %v762
    %v1063 = vpack.c.b16 %v767, %v763
    %v1064 = vpack.c.b16 %v768, %v764
    %v1065 = vpack.c.b16 %v769, %v765
    %v1066 = vpack.c.b16 %v774, %v770
    %v1067 = vpack.c.b16 %v775, %v771
    %v1068 = vpack.c.b16 %v776, %v772
    %v1069 = vpack.c.b16 %v777, %v773
    %v1070 = vpack.c.b16 %v782, %v778
    %v1071 = vpack.c.b16 %v783, %v779
    %v1072 = vpack.c.b16 %v784, %v780
    %v1073 = vpack.c.b16 %v785, %v781
    %v1074 = vpack.c.b16 %v790, %v786
    %v1075 = vpack.c.b16 %v791, %v787
    %v1076 = vpack.c.b16 %v792, %v788
    %v1077 = vpack.c.b16 %v793, %v789
    %v1078 = vpack.c.b16 %v798, %v794
    %v1079 = vpack.c.b16 %v799, %v795
    %v1080 = vpack.c.b16 %v800, %v796
    %v1081 = vpack.c.b16 %v801, %v797
    %v1082 = vpack.c.b16 %v806, %v802
    %v1083 = vpack.c.b16 %v807, %v803
    %v1084 = vpack.c.b16 %v808, %v804
    %v1085 = vpack.c.b16 %v809, %v805
    %v1086 = vpack.c.b16 %v814, %v810
    %v1087 = vpack.c.b16 %v815, %v811
    %v1088 = vpack.c.b16 %v816, %v812
    %v1089 = vpack.c.b16 %v817, %v813
    %v1090 = vpack.c.b16 %v822, %v818
    %v1091 = vpack.c.b16 %v823, %v819
    %v1092 = vpack.c.b16 %v824, %v820
    %v1093 = vpack.c.b16 %v825, %v821
    %v1094 = vpack.c.b16 %v830, %v826
    %v1095 = vpack.c.b16 %v831, %v827
    %v1096 = vpack.c.b16 %v832, %v828
    %v1097 = vpack.c.b16 %v833, %v829
    %v1098 = vpack.c.b16 %v838, %v834
    %v1099 = vpack.c.b16 %v839, %v835
    %v1100 = vpack.c.b16 %v840, %v836
    %v1101 = vpack.c.b16 %v841, %v837
    %v1102 = vpack.c.b16 %v846, %v842
    %v1103 = vpack.c.b16 %v847, %v843
    %v1104 = vpack.c.b16 %v848, %v844
    %v1105 = vpack.c.b16 %v849, %v845
    %v1106 = vpack.c.b16 %v854, %v850
    %v1107 = vpack.c.b16 %v855, %v851
    %v1108 = vpack.c.b16 %v856, %v852
    %v1109 = vpack.c.b16 %v857, %v853
    %v1110 = vpack.c.b16 %v862, %v858
    %v1111 = vpack.c.b16 %v863, %v859
    %v1112 = vpack.c.b16 %v864, %v860
    %v1113 = vpack.c.b16 %v865, %v861
    %v1114 = vpack.c.b16 %v870, %v866
    %v1115 = vpack.c.b16 %v871, %v867
    %v1116 = vpack.c.b16 %v872, %v868
    %v1117 = vpack.c.b16 %v873, %v869
    %v1118 = vpack.c.b16 %v878, %v874
    %v1119 = vpack.c.b16 %v879, %v875
    %v1120 = vpack.c.b16 %v880, %v876
    %v1121 = vpack.c.b16 %v881, %v877
    %v1122 = vpack.c.b16 %v886, %v882
    %v1123 = vpack.c.b16 %v887, %v883
    %v1124 = vpack.c.b16 %v888, %v884
    %v1125 = vpack.c.b16 %v889, %v885
    %v1126 = vpack.c.b16 %v894, %v890
    %v1127 = vpack.c.b16 %v895, %v891
    %v1128 = vpack.c.b16 %v896, %v892
    %v1129 = vpack.c.b16 %v897, %v893
    %v1130 = vpack.c.b16 %v902, %v898
    %v1131 = vpack.c.b16 %v903, %v899
    %v1132 = vpack.c.b16 %v904, %v900
    %v1133 = vpack.c.b16 %v905, %v901
    %v1134 = vpack.c.b16 %v910, %v906
    %v1135 = vpack.c.b16 %v911, %v907
    %v1136 = vpack.c.b16 %v912, %v908
    %v1137 = vpack.c.b16 %v913, %v909
    %v1138 = vpack.c.b16 %v918, %v914
    %v1139 = vpack.c.b16 %v919, %v915
    %v1140 = vpack.c.b16 %v920, %v916
    %v1141 = vpack.c.b16 %v921, %v917
    %v1142 = vpack.c.b16 %v926, %v922
    %v1143 = vpack.c.b16 %v927, %v923
    %v1144 = vpack.c.b16 %v928, %v924
    %v1145 = vpack.c.b16 %v929, %v925
    %v1146 = vpack.c.b16 %v934, %v930
    %v1147 = vpack.c.b16 %v935, %v931
    %v1148 = vpack.c.b16 %v936, %v932
    %v1149 = vpack.c.b16 %v937, %v933
    %v1150 = vpack.c.b16 %v942, %v938
    %v1151 = vpack.c.b16 %v943, %v939
    %v1152 = vpack.c.b16 %v944, %v940
    %v1153 = vpack.c.b16 %v945, %v941
    %v1154 = vpack.c.b16 %v950, %v946
    %v1155 = vpack.c.b16 %v951, %v947
    %v1156 = vpack.c.b16 %v952, %v948
    %v1157 = vpack.c.b16 %v953, %v949
    %v1158 = vpack.c.b16 %v958, %v954
    %v1159 = vpack.c.b16 %v959, %v955
    %v1160 = vpack.c.b16 %v960, %v956
    %v1161 = vpack.c.b16 %v961, %v957
    %v1162 = vpack.c.b16 %v966, %v962
    %v1163 = vpack.c.b16 %v967, %v963
    %v1164 = vpack.c.b16 %v968, %v964
    %v1165 = vpack.c.b16 %v969, %v965
    %v1166 = vpack.c.b16 %v974, %v970
    %v1167 = vpack.c.b16 %v975, %v971
    %v1168 = vpack.c.b16 %v976, %v972
    %v1169 = vpack.c.b16 %v977, %v973
    %1362 = vmatprep.subr.bf16.mxu0 %v1007
    %1363 = vmatpush1.bf16.msra.mxu0 %v1006
    %1364 = vmatprep.subr.bf16.mxu0 %v1003
    %1365 = vmatpush1.bf16.msra.mxu0 %v1002
    %1366 = vmatprep.subr.bf16.mxu0 %v999
    %1367 = vmatpush1.bf16.msra.mxu0 %v998
    %1368 = vmatprep.subr.bf16.mxu0 %v995
    %1369 = vmatpush1.bf16.msra.mxu0 %v994
    %1370 = vmatprep.subr.bf16.mxu0 %v991
    %1371 = vmatpush1.bf16.msra.mxu0 %v990
    %1372 = vmatprep.subr.bf16.mxu0 %v987
    %1373 = vmatpush1.bf16.msra.mxu0 %v986
    %1374 = vmatprep.subr.bf16.mxu0 %v983
    %1375 = vmatpush1.bf16.msra.mxu0 %v982
    %1376 = vmatprep.subr.bf16.mxu0 %v979
    %1377 = vmatpush1.bf16.msra.mxu0 %v978
    %1378 = vmatprep.subr.bf16.mxu0 %v1039
    %1379 = vmatpush2.bf16.msra.mxu0 %v1038
    %1380 = vmatprep.subr.bf16.mxu0 %v1035
    %1381 = vmatpush2.bf16.msra.mxu0 %v1034
    %1382 = vmatprep.subr.bf16.mxu0 %v1031
    %1383 = vmatpush2.bf16.msra.mxu0 %v1030
    %1384 = vmatprep.subr.bf16.mxu0 %v1027
    %1385 = vmatpush2.bf16.msra.mxu0 %v1026
    %1386 = vmatprep.subr.bf16.mxu0 %v1023
    %1387 = vmatpush2.bf16.msra.mxu0 %v1022
    %1388 = vmatprep.subr.bf16.mxu0 %v1019
    %1389 = vmatpush2.bf16.msra.mxu0 %v1018
    %1390 = vmatprep.subr.bf16.mxu0 %v1015
    %1391 = vmatpush2.bf16.msra.mxu0 %v1014
    %1392 = vmatprep.subr.bf16.mxu0 %v1011
    %1393 = vmatpush2.bf16.msra.mxu0 %v1010
    %1394 = vmatprep.mubr.bf16.mxu0 %v183
    %1395 = vmatmul.mubr.bf16.gmra.mxu0 %v182
    %v1396 = vpop.f32.mrf.mxu0
    %v1397 = vadd.f32 %v385, %v1396
    %v1398 = vpop.f32.mrf.mxu0
    %v1399 = vadd.f32 %v389, %v1398
    %v1400 = vpop.f32.mrf.mxu0
    %v1401 = vpop.f32.mrf.mxu0
    %1402 = vdwg.mxu0
    %1403 = vmatprep.subr.bf16.mxu0 %v1071
    %1404 = vmatpush1.bf16.msra.mxu0 %v1070
    %1405 = vmatprep.subr.bf16.mxu0 %v1067
    %1406 = vmatpush1.bf16.msra.mxu0 %v1066
    %1407 = vmatprep.subr.bf16.mxu0 %v1063
    %1408 = vmatpush1.bf16.msra.mxu0 %v1062
    %1409 = vmatprep.subr.bf16.mxu0 %v1059
    %1410 = vmatpush1.bf16.msra.mxu0 %v1058
    %1411 = vmatprep.subr.bf16.mxu0 %v1055
    %1412 = vmatpush1.bf16.msra.mxu0 %v1054
    %1413 = vmatprep.subr.bf16.mxu0 %v1051
    %1414 = vmatpush1.bf16.msra.mxu0 %v1050
    %1415 = vmatprep.subr.bf16.mxu0 %v1047
    %1416 = vmatpush1.bf16.msra.mxu0 %v1046
    %1417 = vmatprep.subr.bf16.mxu0 %v1043
    %1418 = vmatpush1.bf16.msra.mxu0 %v1042
    %1419 = vmatprep.subr.bf16.mxu0 %v1103
    %1420 = vmatpush2.bf16.msra.mxu0 %v1102
    %1421 = vmatprep.subr.bf16.mxu0 %v1099
    %1422 = vmatpush2.bf16.msra.mxu0 %v1098
    %1423 = vmatprep.subr.bf16.mxu0 %v1095
    %1424 = vmatpush2.bf16.msra.mxu0 %v1094
    %1425 = vmatprep.subr.bf16.mxu0 %v1091
    %1426 = vmatpush2.bf16.msra.mxu0 %v1090
    %1427 = vmatprep.subr.bf16.mxu0 %v1087
    %1428 = vmatpush2.bf16.msra.mxu0 %v1086
    %1429 = vmatprep.subr.bf16.mxu0 %v1083
    %1430 = vmatpush2.bf16.msra.mxu0 %v1082
    %1431 = vmatprep.subr.bf16.mxu0 %v1079
    %1432 = vmatpush2.bf16.msra.mxu0 %v1078
    %1433 = vmatprep.subr.bf16.mxu0 %v1075
    %1434 = vmatpush2.bf16.msra.mxu0 %v1074
    %1435 = vmatprep.mubr.bf16.mxu0 %v185
    %1436 = vmatmul.mubr.bf16.gmra.mxu0 %v184
    %v1437 = vpop.f32.mrf.mxu0
    %v1438 = vadd.f32 %v1397, %v1437
    %v1439 = vpop.f32.mrf.mxu0
    %v1440 = vadd.f32 %v1399, %v1439
    %v1441 = vpop.f32.mrf.mxu0
    %v1442 = vpop.f32.mrf.mxu0
    %1443 = vdwg.mxu0
    %1444 = vmatprep.subr.bf16.mxu0 %v1135
    %1445 = vmatpush1.bf16.msra.mxu0 %v1134
    %1446 = vmatprep.subr.bf16.mxu0 %v1131
    %1447 = vmatpush1.bf16.msra.mxu0 %v1130
    %1448 = vmatprep.subr.bf16.mxu0 %v1127
    %1449 = vmatpush1.bf16.msra.mxu0 %v1126
    %1450 = vmatprep.subr.bf16.mxu0 %v1123
    %1451 = vmatpush1.bf16.msra.mxu0 %v1122
    %1452 = vmatprep.subr.bf16.mxu0 %v1119
    %1453 = vmatpush1.bf16.msra.mxu0 %v1118
    %1454 = vmatprep.subr.bf16.mxu0 %v1115
    %1455 = vmatpush1.bf16.msra.mxu0 %v1114
    %1456 = vmatprep.subr.bf16.mxu0 %v1111
    %1457 = vmatpush1.bf16.msra.mxu0 %v1110
    %1458 = vmatprep.subr.bf16.mxu0 %v1107
    %1459 = vmatpush1.bf16.msra.mxu0 %v1106
    %1460 = vmatprep.subr.bf16.mxu0 %v1167
    %1461 = vmatpush2.bf16.msra.mxu0 %v1166
    %1462 = vmatprep.subr.bf16.mxu0 %v1163
    %1463 = vmatpush2.bf16.msra.mxu0 %v1162
    %1464 = vmatprep.subr.bf16.mxu0 %v1159
    %1465 = vmatpush2.bf16.msra.mxu0 %v1158
    %1466 = vmatprep.subr.bf16.mxu0 %v1155
    %1467 = vmatpush2.bf16.msra.mxu0 %v1154
    %1468 = vmatprep.subr.bf16.mxu0 %v1151
    %1469 = vmatpush2.bf16.msra.mxu0 %v1150
    %1470 = vmatprep.subr.bf16.mxu0 %v1147
    %1471 = vmatpush2.bf16.msra.mxu0 %v1146
    %1472 = vmatprep.subr.bf16.mxu0 %v1143
    %1473 = vmatpush2.bf16.msra.mxu0 %v1142
    %1474 = vmatprep.subr.bf16.mxu0 %v1139
    %1475 = vmatpush2.bf16.msra.mxu0 %v1138
    %1476 = vmatprep.mubr.bf16.mxu0 %v187
    %1477 = vmatmul.mubr.bf16.gmra.mxu0 %v186
    %v1478 = vpop.f32.mrf.mxu0
    %v1479 = vadd.f32 %v1438, %v1478
    %v1480 = vpop.f32.mrf.mxu0
    %v1481 = vadd.f32 %v1440, %v1480
    %v1482 = vpop.f32.mrf.mxu0
    %v1483 = vpop.f32.mrf.mxu0
    %1484 = vdwg.mxu0
    %1485 = vmatprep.subr.bf16.mxu0 %v1009
    %1486 = vmatpush1.bf16.msra.mxu0 %v1008
    %1487 = vmatprep.subr.bf16.mxu0 %v1005
    %1488 = vmatpush1.bf16.msra.mxu0 %v1004
    %1489 = vmatprep.subr.bf16.mxu0 %v1001
    %1490 = vmatpush1.bf16.msra.mxu0 %v1000
    %1491 = vmatprep.subr.bf16.mxu0 %v997
    %1492 = vmatpush1.bf16.msra.mxu0 %v996
    %1493 = vmatprep.subr.bf16.mxu0 %v993
    %1494 = vmatpush1.bf16.msra.mxu0 %v992
    %1495 = vmatprep.subr.bf16.mxu0 %v989
    %1496 = vmatpush1.bf16.msra.mxu0 %v988
    %1497 = vmatprep.subr.bf16.mxu0 %v985
    %1498 = vmatpush1.bf16.msra.mxu0 %v984
    %1499 = vmatprep.subr.bf16.mxu0 %v981
    %1500 = vmatpush1.bf16.msra.mxu0 %v980
    %1501 = vmatprep.subr.bf16.mxu0 %v1041
    %1502 = vmatpush2.bf16.msra.mxu0 %v1040
    %1503 = vmatprep.subr.bf16.mxu0 %v1037
    %1504 = vmatpush2.bf16.msra.mxu0 %v1036
    %1505 = vmatprep.subr.bf16.mxu0 %v1033
    %1506 = vmatpush2.bf16.msra.mxu0 %v1032
    %1507 = vmatprep.subr.bf16.mxu0 %v1029
    %1508 = vmatpush2.bf16.msra.mxu0 %v1028
    %1509 = vmatprep.subr.bf16.mxu0 %v1025
    %1510 = vmatpush2.bf16.msra.mxu0 %v1024
    %1511 = vmatprep.subr.bf16.mxu0 %v1021
    %1512 = vmatpush2.bf16.msra.mxu0 %v1020
    %1513 = vmatprep.subr.bf16.mxu0 %v1017
    %1514 = vmatpush2.bf16.msra.mxu0 %v1016
    %1515 = vmatprep.subr.bf16.mxu0 %v1013
    %1516 = vmatpush2.bf16.msra.mxu0 %v1012
    %1517 = vmatprep.mubr.bf16.mxu0 %v183
    %1518 = vmatmul.mubr.bf16.gmra.mxu0 %v182
    %v1519 = vpop.f32.mrf.mxu0
    %v1520 = vadd.f32 %v393, %v1519
    %v1521 = vpop.f32.mrf.mxu0
    %v1522 = vadd.f32 %v397, %v1521
    %v1523 = vpop.f32.mrf.mxu0
    %v1524 = vpop.f32.mrf.mxu0
    %1525 = vdwg.mxu0
    %1526 = vmatprep.subr.bf16.mxu0 %v1073
    %1527 = vmatpush1.bf16.msra.mxu0 %v1072
    %1528 = vmatprep.subr.bf16.mxu0 %v1069
    %1529 = vmatpush1.bf16.msra.mxu0 %v1068
    %1530 = vmatprep.subr.bf16.mxu0 %v1065
    %1531 = vmatpush1.bf16.msra.mxu0 %v1064
    %1532 = vmatprep.subr.bf16.mxu0 %v1061
    %1533 = vmatpush1.bf16.msra.mxu0 %v1060
    %1534 = vmatprep.subr.bf16.mxu0 %v1057
    %1535 = vmatpush1.bf16.msra.mxu0 %v1056
    %1536 = vmatprep.subr.bf16.mxu0 %v1053
    %1537 = vmatpush1.bf16.msra.mxu0 %v1052
    %1538 = vmatprep.subr.bf16.mxu0 %v1049
    %1539 = vmatpush1.bf16.msra.mxu0 %v1048
    %1540 = vmatprep.subr.bf16.mxu0 %v1045
    %1541 = vmatpush1.bf16.msra.mxu0 %v1044
    %1542 = vmatprep.subr.bf16.mxu0 %v1105
    %1543 = vmatpush2.bf16.msra.mxu0 %v1104
    %1544 = vmatprep.subr.bf16.mxu0 %v1101
    %1545 = vmatpush2.bf16.msra.mxu0 %v1100
    %1546 = vmatprep.subr.bf16.mxu0 %v1097
    %1547 = vmatpush2.bf16.msra.mxu0 %v1096
    %1548 = vmatprep.subr.bf16.mxu0 %v1093
    %1549 = vmatpush2.bf16.msra.mxu0 %v1092
    %1550 = vmatprep.subr.bf16.mxu0 %v1089
    %1551 = vmatpush2.bf16.msra.mxu0 %v1088
    %1552 = vmatprep.subr.bf16.mxu0 %v1085
    %1553 = vmatpush2.bf16.msra.mxu0 %v1084
    %1554 = vmatprep.subr.bf16.mxu0 %v1081
    %1555 = vmatpush2.bf16.msra.mxu0 %v1080
    %1556 = vmatprep.subr.bf16.mxu0 %v1077
    %1557 = vmatpush2.bf16.msra.mxu0 %v1076
    %1558 = vmatprep.mubr.bf16.mxu0 %v185
    %1559 = vmatmul.mubr.bf16.gmra.mxu0 %v184
    %v1560 = vpop.f32.mrf.mxu0
    %v1561 = vadd.f32 %v1520, %v1560
    %v1562 = vpop.f32.mrf.mxu0
    %v1563 = vadd.f32 %v1522, %v1562
    %v1564 = vpop.f32.mrf.mxu0
    %v1565 = vpop.f32.mrf.mxu0
    %1566 = vdwg.mxu0
    %1567 = vmatprep.subr.bf16.mxu0 %v1137
    %1568 = vmatpush1.bf16.msra.mxu0 %v1136
    %1569 = vmatprep.subr.bf16.mxu0 %v1133
    %1570 = vmatpush1.bf16.msra.mxu0 %v1132
    %1571 = vmatprep.subr.bf16.mxu0 %v1129
    %1572 = vmatpush1.bf16.msra.mxu0 %v1128
    %1573 = vmatprep.subr.bf16.mxu0 %v1125
    %1574 = vmatpush1.bf16.msra.mxu0 %v1124
    %1575 = vmatprep.subr.bf16.mxu0 %v1121
    %1576 = vmatpush1.bf16.msra.mxu0 %v1120
    %1577 = vmatprep.subr.bf16.mxu0 %v1117
    %1578 = vmatpush1.bf16.msra.mxu0 %v1116
    %1579 = vmatprep.subr.bf16.mxu0 %v1113
    %1580 = vmatpush1.bf16.msra.mxu0 %v1112
    %1581 = vmatprep.subr.bf16.mxu0 %v1109
    %1582 = vmatpush1.bf16.msra.mxu0 %v1108
    %1583 = vmatprep.subr.bf16.mxu0 %v1169
    %1584 = vmatpush2.bf16.msra.mxu0 %v1168
    %1585 = vmatprep.subr.bf16.mxu0 %v1165
    %1586 = vmatpush2.bf16.msra.mxu0 %v1164
    %1587 = vmatprep.subr.bf16.mxu0 %v1161
    %1588 = vmatpush2.bf16.msra.mxu0 %v1160
    %1589 = vmatprep.subr.bf16.mxu0 %v1157
    %1590 = vmatpush2.bf16.msra.mxu0 %v1156
    %1591 = vmatprep.subr.bf16.mxu0 %v1153
    %1592 = vmatpush2.bf16.msra.mxu0 %v1152
    %1593 = vmatprep.subr.bf16.mxu0 %v1149
    %1594 = vmatpush2.bf16.msra.mxu0 %v1148
    %1595 = vmatprep.subr.bf16.mxu0 %v1145
    %1596 = vmatpush2.bf16.msra.mxu0 %v1144
    %1597 = vmatprep.subr.bf16.mxu0 %v1141
    %1598 = vmatpush2.bf16.msra.mxu0 %v1140
    %1599 = vmatprep.mubr.bf16.mxu0 %v187
    %1600 = vmatmul.mubr.bf16.gmra.mxu0 %v186
    %v1601 = vpop.f32.mrf.mxu0
    %v1602 = vadd.f32 %v1561, %v1601
    %v1603 = vpop.f32.mrf.mxu0
    %v1604 = vadd.f32 %v1563, %v1603
    %v1605 = vpop.f32.mrf.mxu0
    %v1606 = vpop.f32.mrf.mxu0
    %1607 = vdwg.mxu0
    %v1608 = vmax.f32 %v1479, 0.0
    %v1609 = vmax.f32 %v1481, 0.0
    %v1610 = vmax.f32 %v1602, 0.0
    %v1611 = vmax.f32 %v1604, 0.0
    %v1612 = vpack.c.bf16 %v1608, %v1608
    %v1613 = vpack.c.bf16 %v1609, %v1609
    %v1614 = vpack.c.bf16 %v1610, %v1610
    %v1615 = vpack.c.bf16 %v1611, %v1611
    %v1616 = vld [vmem:[#allocation8] sm:$0xf]
    %v1617 = vld [vmem:[#allocation8 + $0x4] sm:$0xf]
    %v1618 = vld [vmem:[#allocation8 + $0x8] sm:$0xf]
    %v1619 = vld [vmem:[#allocation8 + $0xc] sm:$0xf]
    %v1620 = vld [vmem:[#allocation8 + $0x10] sm:$0xf]
    %v1621 = vld [vmem:[#allocation8 + $0x14] sm:$0xf]
    %v1622 = vld [vmem:[#allocation8 + $0x18] sm:$0xf]
    %v1623 = vld [vmem:[#allocation8 + $0x1c] sm:$0xf]
    %v1624 = vld [vmem:[#allocation8 + $0x20] sm:$0xf]
    %v1625 = vld [vmem:[#allocation8 + $0x24] sm:$0xf]
    %v1626 = vld [vmem:[#allocation8 + $0x28] sm:$0xf]
    %v1627 = vld [vmem:[#allocation8 + $0x2c] sm:$0xf]
    %v1628 = vld [vmem:[#allocation8 + $0x30] sm:$0xf]
    %v1629 = vld [vmem:[#allocation8 + $0x34] sm:$0xf]
    %v1630 = vld [vmem:[#allocation8 + $0x38] sm:$0xf]
    %v1631 = vld [vmem:[#allocation8 + $0x3c] sm:$0xf]
    %v1632 = vld [vmem:[#allocation8 + $0x40] sm:$0xf]
    %v1633 = vld [vmem:[#allocation8 + $0x44] sm:$0xf]
    %v1634 = vld [vmem:[#allocation8 + $0x48] sm:$0xf]
    %v1635 = vld [vmem:[#allocation8 + $0x4c] sm:$0xf]
    %v1636 = vld [vmem:[#allocation8 + $0x50] sm:$0xf]
    %v1637 = vld [vmem:[#allocation8 + $0x54] sm:$0xf]
    %v1638 = vld [vmem:[#allocation8 + $0x58] sm:$0xf]
    %v1639 = vld [vmem:[#allocation8 + $0x5c] sm:$0xf]
    %v1640 = vld [vmem:[#allocation8 + $0x60] sm:$0xf]
    %v1641 = vld [vmem:[#allocation8 + $0x64] sm:$0xf]
    %v1642 = vld [vmem:[#allocation8 + $0x68] sm:$0xf]
    %v1643 = vld [vmem:[#allocation8 + $0x6c] sm:$0xf]
    %v1644 = vld [vmem:[#allocation8 + $0x70] sm:$0xf]
    %v1645 = vld [vmem:[#allocation8 + $0x74] sm:$0xf]
    %v1646 = vld [vmem:[#allocation8 + $0x78] sm:$0xf]
    %v1647 = vld [vmem:[#allocation8 + $0x7c] sm:$0xf]
    %v1648 = vld [vmem:[#allocation8 + $0x80] sm:$0xf]
    %v1649 = vld [vmem:[#allocation8 + $0x84] sm:$0xf]
    %v1650 = vld [vmem:[#allocation8 + $0x88] sm:$0xf]
    %v1651 = vld [vmem:[#allocation8 + $0x8c] sm:$0xf]
    %v1652 = vld [vmem:[#allocation8 + $0x90] sm:$0xf]
    %v1653 = vld [vmem:[#allocation8 + $0x94] sm:$0xf]
    %v1654 = vld [vmem:[#allocation8 + $0x98] sm:$0xf]
    %v1655 = vld [vmem:[#allocation8 + $0x9c] sm:$0xf]
    %v1656 = vld [vmem:[#allocation8 + $0xa0] sm:$0xf]
    %v1657 = vld [vmem:[#allocation8 + $0xa4] sm:$0xf]
    %v1658 = vld [vmem:[#allocation8 + $0xa8] sm:$0xf]
    %v1659 = vld [vmem:[#allocation8 + $0xac] sm:$0xf]
    %v1660 = vld [vmem:[#allocation8 + $0xb0] sm:$0xf]
    %v1661 = vld [vmem:[#allocation8 + $0xb4] sm:$0xf]
    %v1662 = vld [vmem:[#allocation8 + $0xb8] sm:$0xf]
    %v1663 = vld [vmem:[#allocation8 + $0xbc] sm:$0xf]
    %v1664 = vld [vmem:[#allocation8 + $0xc0] sm:$0xf]
    %v1665 = vld [vmem:[#allocation8 + $0xc4] sm:$0xf]
    %v1666 = vld [vmem:[#allocation8 + $0xc8] sm:$0xf]
    %v1667 = vld [vmem:[#allocation8 + $0xcc] sm:$0xf]
    %v1668 = vld [vmem:[#allocation8 + $0xd0] sm:$0xf]
    %v1669 = vld [vmem:[#allocation8 + $0xd4] sm:$0xf]
    %v1670 = vld [vmem:[#allocation8 + $0xd8] sm:$0xf]
    %v1671 = vld [vmem:[#allocation8 + $0xdc] sm:$0xf]
    %v1672 = vld [vmem:[#allocation8 + $0xe0] sm:$0xf]
    %v1673 = vld [vmem:[#allocation8 + $0xe4] sm:$0xf]
    %v1674 = vld [vmem:[#allocation8 + $0xe8] sm:$0xf]
    %v1675 = vld [vmem:[#allocation8 + $0xec] sm:$0xf]
    %v1676 = vld [vmem:[#allocation8 + $0xf0] sm:$0xf]
    %v1677 = vld [vmem:[#allocation8 + $0xf4] sm:$0xf]
    %v1678 = vld [vmem:[#allocation8 + $0xf8] sm:$0xf]
    %v1679 = vld [vmem:[#allocation8 + $0xfc] sm:$0xf]
    %v1680 = vld [vmem:[%s4] sm:$0x1]
    %v1682 = vlaneseq
    %v1683 = vshrl.u32 %v1682, 7
    %v1684 = vsub.s32 0, %v1683
    %v1685 = vrot.slane %v1680, %v1684
    %v1751 = vunpack.c.l.b16 %v1616
    %v1752 = vunpack.c.l.b16 %v1617
    %v1753 = vunpack.c.l.b16 %v1618
    %v1754 = vunpack.c.l.b16 %v1619
    %v1755 = vunpack.c.l.b16 %v1620
    %v1756 = vunpack.c.l.b16 %v1621
    %v1757 = vunpack.c.l.b16 %v1622
    %v1758 = vunpack.c.l.b16 %v1623
    %v1759 = vunpack.c.l.b16 %v1624
    %v1760 = vunpack.c.l.b16 %v1625
    %v1761 = vunpack.c.l.b16 %v1626
    %v1762 = vunpack.c.l.b16 %v1627
    %v1763 = vunpack.c.l.b16 %v1628
    %v1764 = vunpack.c.l.b16 %v1629
    %v1765 = vunpack.c.l.b16 %v1630
    %v1766 = vunpack.c.l.b16 %v1631
    %v1767 = vunpack.c.l.b16 %v1632
    %v1768 = vunpack.c.l.b16 %v1633
    %v1769 = vunpack.c.l.b16 %v1634
    %v1770 = vunpack.c.l.b16 %v1635
    %v1771 = vunpack.c.l.b16 %v1636
    %v1772 = vunpack.c.l.b16 %v1637
    %v1773 = vunpack.c.l.b16 %v1638
    %v1774 = vunpack.c.l.b16 %v1639
    %v1775 = vunpack.c.l.b16 %v1640
    %v1776 = vunpack.c.l.b16 %v1641
    %v1777 = vunpack.c.l.b16 %v1642
    %v1778 = vunpack.c.l.b16 %v1643
    %v1779 = vunpack.c.l.b16 %v1644
    %v1780 = vunpack.c.l.b16 %v1645
    %v1781 = vunpack.c.l.b16 %v1646
    %v1782 = vunpack.c.l.b16 %v1647
    %v1783 = vunpack.c.l.b16 %v1648
    %v1784 = vunpack.c.l.b16 %v1649
    %v1785 = vunpack.c.l.b16 %v1650
    %v1786 = vunpack.c.l.b16 %v1651
    %v1787 = vunpack.c.l.b16 %v1652
    %v1788 = vunpack.c.l.b16 %v1653
    %v1789 = vunpack.c.l.b16 %v1654
    %v1790 = vunpack.c.l.b16 %v1655
    %v1791 = vunpack.c.l.b16 %v1656
    %v1792 = vunpack.c.l.b16 %v1657
    %v1793 = vunpack.c.l.b16 %v1658
    %v1794 = vunpack.c.l.b16 %v1659
    %v1795 = vunpack.c.l.b16 %v1660
    %v1796 = vunpack.c.l.b16 %v1661
    %v1797 = vunpack.c.l.b16 %v1662
    %v1798 = vunpack.c.l.b16 %v1663
    %v1799 = vunpack.c.l.b16 %v1664
    %v1800 = vunpack.c.l.b16 %v1665
    %v1801 = vunpack.c.l.b16 %v1666
    %v1802 = vunpack.c.l.b16 %v1667
    %v1803 = vunpack.c.l.b16 %v1668
    %v1804 = vunpack.c.l.b16 %v1669
    %v1805 = vunpack.c.l.b16 %v1670
    %v1806 = vunpack.c.l.b16 %v1671
    %v1807 = vunpack.c.l.b16 %v1672
    %v1808 = vunpack.c.l.b16 %v1673
    %v1809 = vunpack.c.l.b16 %v1674
    %v1810 = vunpack.c.l.b16 %v1675
    %v1811 = vunpack.c.l.b16 %v1676
    %v1812 = vunpack.c.l.b16 %v1677
    %v1813 = vunpack.c.l.b16 %v1678
    %v1814 = vunpack.c.l.b16 %v1679
    %v1815 = vpack.c.b16 %v1752, %v1751
    %v1816 = vpack.c.b16 %v1754, %v1753
    %v1817 = vpack.c.b16 %v1756, %v1755
    %v1818 = vpack.c.b16 %v1758, %v1757
    %v1819 = vpack.c.b16 %v1760, %v1759
    %v1820 = vpack.c.b16 %v1762, %v1761
    %v1821 = vpack.c.b16 %v1764, %v1763
    %v1822 = vpack.c.b16 %v1766, %v1765
    %v1823 = vpack.c.b16 %v1768, %v1767
    %v1824 = vpack.c.b16 %v1770, %v1769
    %v1825 = vpack.c.b16 %v1772, %v1771
    %v1826 = vpack.c.b16 %v1774, %v1773
    %v1827 = vpack.c.b16 %v1776, %v1775
    %v1828 = vpack.c.b16 %v1778, %v1777
    %v1829 = vpack.c.b16 %v1780, %v1779
    %v1830 = vpack.c.b16 %v1782, %v1781
    %v1831 = vpack.c.b16 %v1784, %v1783
    %v1832 = vpack.c.b16 %v1786, %v1785
    %v1833 = vpack.c.b16 %v1788, %v1787
    %v1834 = vpack.c.b16 %v1790, %v1789
    %v1835 = vpack.c.b16 %v1792, %v1791
    %v1836 = vpack.c.b16 %v1794, %v1793
    %v1837 = vpack.c.b16 %v1796, %v1795
    %v1838 = vpack.c.b16 %v1798, %v1797
    %v1839 = vpack.c.b16 %v1800, %v1799
    %v1840 = vpack.c.b16 %v1802, %v1801
    %v1841 = vpack.c.b16 %v1804, %v1803
    %v1842 = vpack.c.b16 %v1806, %v1805
    %v1843 = vpack.c.b16 %v1808, %v1807
    %v1844 = vpack.c.b16 %v1810, %v1809
    %v1845 = vpack.c.b16 %v1812, %v1811
    %v1846 = vpack.c.b16 %v1814, %v1813
    %1879 = vmatprep.subr.bf16.mxu0 0
    %1880 = vmatpush1.bf16.msra.mxu0 %v1822
    %1881 = vmatprep.subr.bf16.mxu0 0
    %1882 = vmatpush1.bf16.msra.mxu0 %v1821
    %1883 = vmatprep.subr.bf16.mxu0 0
    %1884 = vmatpush1.bf16.msra.mxu0 %v1820
    %1885 = vmatprep.subr.bf16.mxu0 0
    %1886 = vmatpush1.bf16.msra.mxu0 %v1819
    %1887 = vmatprep.subr.bf16.mxu0 0
    %1888 = vmatpush1.bf16.msra.mxu0 %v1818
    %1889 = vmatprep.subr.bf16.mxu0 0
    %1890 = vmatpush1.bf16.msra.mxu0 %v1817
    %1891 = vmatprep.subr.bf16.mxu0 0
    %1892 = vmatpush1.bf16.msra.mxu0 %v1816
    %1893 = vmatprep.subr.bf16.mxu0 0
    %1894 = vmatpush1.bf16.msra.mxu0 %v1815
    %1895 = vmatprep.subr.bf16.mxu0 0
    %1896 = vmatpush2.bf16.msra.mxu0 %v1830
    %1897 = vmatprep.subr.bf16.mxu0 0
    %1898 = vmatpush2.bf16.msra.mxu0 %v1829
    %1899 = vmatprep.subr.bf16.mxu0 0
    %1900 = vmatpush2.bf16.msra.mxu0 %v1828
    %1901 = vmatprep.subr.bf16.mxu0 0
    %1902 = vmatpush2.bf16.msra.mxu0 %v1827
    %1903 = vmatprep.subr.bf16.mxu0 0
    %1904 = vmatpush2.bf16.msra.mxu0 %v1826
    %1905 = vmatprep.subr.bf16.mxu0 0
    %1906 = vmatpush2.bf16.msra.mxu0 %v1825
    %1907 = vmatprep.subr.bf16.mxu0 0
    %1908 = vmatpush2.bf16.msra.mxu0 %v1824
    %1909 = vmatprep.subr.bf16.mxu0 0
    %1910 = vmatpush2.bf16.msra.mxu0 %v1823
    %1911 = vmatprep.mubr.bf16.mxu0 %v1613
    %1912 = vmatmul.mubr.bf16.gmra.mxu0 %v1612
    %v1913 = vpop.f32.mrf.mxu0
    %v1914 = vadd.f32 %v1685, %v1913
    %v1915 = vpop.f32.mrf.mxu0
    %v1916 = vpop.f32.mrf.mxu0
    %v1917 = vpop.f32.mrf.mxu0
    %1918 = vdwg.mxu0
    %1919 = vmatprep.subr.bf16.mxu0 0
    %1920 = vmatpush1.bf16.msra.mxu0 %v1838
    %1921 = vmatprep.subr.bf16.mxu0 0
    %1922 = vmatpush1.bf16.msra.mxu0 %v1837
    %1923 = vmatprep.subr.bf16.mxu0 0
    %1924 = vmatpush1.bf16.msra.mxu0 %v1836
    %1925 = vmatprep.subr.bf16.mxu0 0
    %1926 = vmatpush1.bf16.msra.mxu0 %v1835
    %1927 = vmatprep.subr.bf16.mxu0 0
    %1928 = vmatpush1.bf16.msra.mxu0 %v1834
    %1929 = vmatprep.subr.bf16.mxu0 0
    %1930 = vmatpush1.bf16.msra.mxu0 %v1833
    %1931 = vmatprep.subr.bf16.mxu0 0
    %1932 = vmatpush1.bf16.msra.mxu0 %v1832
    %1933 = vmatprep.subr.bf16.mxu0 0
    %1934 = vmatpush1.bf16.msra.mxu0 %v1831
    %1935 = vmatprep.subr.bf16.mxu0 0
    %1936 = vmatpush2.bf16.msra.mxu0 %v1846
    %1937 = vmatprep.subr.bf16.mxu0 0
    %1938 = vmatpush2.bf16.msra.mxu0 %v1845
    %1939 = vmatprep.subr.bf16.mxu0 0
    %1940 = vmatpush2.bf16.msra.mxu0 %v1844
    %1941 = vmatprep.subr.bf16.mxu0 0
    %1942 = vmatpush2.bf16.msra.mxu0 %v1843
    %1943 = vmatprep.subr.bf16.mxu0 0
    %1944 = vmatpush2.bf16.msra.mxu0 %v1842
    %1945 = vmatprep.subr.bf16.mxu0 0
    %1946 = vmatpush2.bf16.msra.mxu0 %v1841
    %1947 = vmatprep.subr.bf16.mxu0 0
    %1948 = vmatpush2.bf16.msra.mxu0 %v1840
    %1949 = vmatprep.subr.bf16.mxu0 0
    %1950 = vmatpush2.bf16.msra.mxu0 %v1839
    %1951 = vmatprep.mubr.bf16.mxu0 %v1615
    %1952 = vmatmul.mubr.bf16.gmra.mxu0 %v1614
    %v1953 = vpop.f32.mrf.mxu0
    %v1954 = vadd.f32 %v1914, %v1953
    %v1955 = vpop.f32.mrf.mxu0
    %v1956 = vpop.f32.mrf.mxu0
    %v1957 = vpop.f32.mrf.mxu0
    %1958 = vdwg.mxu0
    %1959 = vmax.xlane.f32.xlu0 %v1954
    %v1960 = vpop.xlane.xlu0 %1959
    %v1961 = vsub.f32 %v1954, %v1960
    %v1962 = vmul.f32 %v1961, 1.442695
    %v1963 = vpow.pop %v1962
    %1964 = vadd.xlane.f32.xlu0 %v1963
    %v1965 = vpop.xlane.xlu0 %1964
    %v1966 = vlog2.pop %v1965
    %v1967 = vmul.f32 %v1966, 0.6931472
    %v1968 = vsub.f32 %v1961, %v1967
    %1969 = vst [vmem:[#allocation10] sm:$0xff] %v1968
    // Predicated region
    $region38: #{tpu_custom_call.1} parent=1 // pred_check
      _
    $region39: #{tpu_custom_call.1} parent=1 // pred_check_branch
      %1971 = sbr.rel (0) target = $region41
    $region40: #{tpu_custom_call.1} parent=1 // pred_region
      %s1973 = ssub.s32 128, 128
      %1974 = vsyncadd [#allocation4], %s1973
      %s1976 = sshll.u32 [#allocation10], 4
      %s1977 = int_to_ptr.vmem [resolvable:$true] %s1976
      %1979 = dma.vmem_to_hbm [thread:$0]  %s1977, 128, %s5, [#allocation4]
    $region41: #{tpu_custom_call.1} parent=1 // pred_fallthru
      _
    // Predicated region
    $region42: #{tpu_custom_call.1} parent=1 // pred_check
      _
    $region43: #{tpu_custom_call.1} parent=1 // pred_check_branch
      %1981 = sbr.rel (0) target = $region45
    $region44: #{tpu_custom_call.1} parent=1 // pred_region
      %1982 = dma.done [#allocation4], 128
    $region45: #{tpu_custom_call.1} parent=1 // pred_fallthru
      _
    %1983 = vsyncpa [#allocation3], 1
    %1984 = vsyncpa [#allocation6], 1
    %1985 = vsyncpa [#allocation9], 1
    %1986 = vsyncpa [#allocation4], 1

</llo_original>
